<compile_context>
chip_gen: v6e
topology: v6e:2x2x1
jax: 0.10.0
libtpu: 0.0.40
codegen_flags: <defaults>
</compile_context>

<pallas_src>
import jax
import jax.numpy as jnp
from jax.experimental import pallas as pl
from jax.experimental.pallas import tpu as pltpu

HIDDEN = 32
NUM_EXPERT = 16
NUM_SKILL = 12
NUM_TEAM = 8
NUM_TOTAL = NUM_EXPERT + NUM_SKILL + NUM_TEAM  # 36

NODE_TYPES = ("expert", "skill", "team")
EDGE_TYPES = (
    ("team", "includes", "expert"),
    ("expert", "rev_includes", "team"),
    ("expert", "has", "skill"),
    ("skill", "rev_has", "expert"),
)
INCOMING = {
    "expert": (("team", "includes", "expert"), ("skill", "rev_has", "expert")),
    "skill": (("expert", "has", "skill"),),
    "team": (("expert", "rev_includes", "team"),),
}
NUM_NODES = {"expert": NUM_EXPERT, "skill": NUM_SKILL, "team": NUM_TEAM}

# Row layout of the stacked node-feature slab X [36, 32].
#   expert: rows  0:16   skill: rows 16:28   team: rows 28:36
A_ROWS = 80          # adjacency/bias slab rows (8-aligned sub-blocks)
AB_COLS = NUM_TOTAL + HIDDEN   # 36 adjacency cols + 32 bias cols = 68

_VMEM = pl.BlockSpec(memory_space=pltpu.MemorySpace.VMEM)


# ---------------------------------------------------------------------------
# The single fused Pallas kernel (empty grid, full-array VMEM blocks).
# ---------------------------------------------------------------------------
def _fused_forward_kernel(x_ref, ab_ref, w_ref, eli_ref, o_ref):
    f32 = jnp.float32

    X0 = x_ref[...]                      # [36, 32] stacked node features
    AB = ab_ref[...]                     # [80, 68]
    W = w_ref[...]                       # [32, 448]

    A = AB[:, 0:NUM_TOTAL]               # [80, 36] stacked adjacency blocks
    bias1 = AB[0:36, NUM_TOTAL:AB_COLS]  # [36, 32] per-row bias, layer 1
    bias2 = AB[40:76, NUM_TOTAL:AB_COLS]  # [36, 32] per-row bias, layer 2

    # Row-type masks (built once, shared by both layers).
    row = jax.lax.broadcasted_iota(jnp.int32, (NUM_TOTAL, 1), 0)
    m_exp = (row < 16).astype(f32)
    m_skl = ((row >= 16) & (row < 28)).astype(f32)
    m_tm = (row >= 28).astype(f32)

    def colsel(m96):
        # [rows, 96] -> [rows, 32]: pick the 32-wide column block matching the
        # destination node type of each row.
        return m96[:, 0:32] * m_exp + m96[:, 32:64] * m_skl + m96[:, 64:96] * m_tm

    def sage_layer(x, wl, wr, bias, relu):
        # x    [36, 32]   stacked features
        # wl   [32, 128]  [W_l(tm->exp) | W_l(exp->skl) | W_l(exp->tm) | W_l(skl->exp)]
        # wr   [32, 96]   [sum W_r(->exp) | W_r(->skl) | W_r(->tm)]
        # bias [36, 32]   per-row summed bias
        agg = jnp.dot(A, x, preferred_element_type=f32)      # [80, 32]
        aw = jnp.dot(agg, wl, preferred_element_type=f32)    # [80, 128]
        sw = jnp.dot(x, wr, preferred_element_type=f32)      # [36, 96]
        # rows 0:36 of `aw`: dst-aligned main aggregation (one incoming type/dst)
        # rows 40:76, cols 96:128: expert's second incoming type (skill source);
        #   rows beyond 56 are exact zeros (zero adjacency rows).
        out = colsel(aw[0:36, 0:96]) + aw[40:76, 96:128] + colsel(sw) + bias
        if relu:
            out = jnp.maximum(out, 0.0)
        return out

    x1 = sage_layer(X0, W[:, 0:128], W[:, 128:224], bias1, relu=True)    # conv1+ReLU
    x2 = sage_layer(x1, W[:, 224:352], W[:, 352:448], bias2, relu=False)  # conv2

    # Classifier: in-kernel one-hot gather (iota compare) + row-wise dot product.
    n_edges = o_ref.shape[0]
    eli = eli_ref[...]                                        # [E, 2] int32
    j_iota = jax.lax.broadcasted_iota(jnp.int32, (n_edges, NUM_TOTAL), 1)
    g_tm = (j_iota == (eli[:, 0:1] + 28)).astype(f32)         # team rows live at 28:36
    g_exp = (j_iota == eli[:, 1:2]).astype(f32)               # expert rows at 0:16
    ef_tm = jnp.dot(g_tm, x2, preferred_element_type=f32)     # [E, 32]
    ef_exp = jnp.dot(g_exp, x2, preferred_element_type=f32)   # [E, 32]
    o_ref[...] = jnp.sum(ef_tm * ef_exp, axis=-1, keepdims=True)


# ---------------------------------------------------------------------------
# One-time (static) packing: adjacency slab + collapsed weights/biases.
# ---------------------------------------------------------------------------
def build_norm_adj(edge_index, n_src, n_dst):
    """Dense row-normalised adjacency [n_dst, n_src] == PyG mean aggregation."""
    src, dst = edge_index[0], edge_index[1]
    a = jnp.zeros((n_dst, n_src), jnp.float32).at[dst, src].add(1.0)
    deg = a.sum(axis=-1, keepdims=True)
    return a / jnp.maximum(deg, 1.0)


def pack_static(params, adj):
    """Build the AB ([80,68]) and W ([32,448]) slabs once, outside the forward."""
    # ---- adjacency slab [80, 36]: columns are stacked source-node columns
    #      (expert 0:16, skill 16:28, team 28:36).
    A = jnp.zeros((A_ROWS, NUM_TOTAL), jnp.float32)
    A = A.at[0:16, 28:36].set(adj[("team", "includes", "expert")])       # dst expert <- team
    A = A.at[16:28, 0:16].set(adj[("expert", "has", "skill")])           # dst skill  <- expert
    A = A.at[28:36, 0:16].set(adj[("expert", "rev_includes", "team")])   # dst team   <- expert
    A = A.at[40:56, 16:28].set(adj[("skill", "rev_has", "expert")])      # dst expert <- skill (extra)

    # ---- per-row summed bias [80, 32]: layer1 rows 0:36, layer2 rows 40:76
    def layer_bias_rows(lp):
        b_exp = lp[("team", "includes", "expert")]["b_l"] + lp[("skill", "rev_has", "expert")]["b_l"]
        b_skl = lp[("expert", "has", "skill")]["b_l"]
        b_tm = lp[("expert", "rev_includes", "team")]["b_l"]
        return jnp.concatenate(
            [jnp.tile(b_exp, (NUM_EXPERT, 1)),
             jnp.tile(b_skl, (NUM_SKILL, 1)),
             jnp.tile(b_tm, (NUM_TEAM, 1))], axis=0)          # [36, 32]

    B = jnp.zeros((A_ROWS, HIDDEN), jnp.float32)
    B = B.at[0:36].set(layer_bias_rows(params["conv1"]))
    B = B.at[40:76].set(layer_bias_rows(params["conv2"]))

    AB = jnp.concatenate([A, B], axis=1)                      # [80, 68]

    # ---- weight slab [32, 448] = [W1_L | W1_R | W2_L | W2_R]
    def layer_w(lp):
        wl = jnp.concatenate(
            [lp[("team", "includes", "expert")]["w_l"],       # cols 0:32
             lp[("expert", "has", "skill")]["w_l"],           # cols 32:64
             lp[("expert", "rev_includes", "team")]["w_l"],   # cols 64:96
             lp[("skill", "rev_has", "expert")]["w_l"]],      # cols 96:128 (expert extra)
            axis=1)                                           # [32, 128]
        wr = jnp.concatenate(
            [lp[("team", "includes", "expert")]["w_r"] + lp[("skill", "rev_has", "expert")]["w_r"],
             lp[("expert", "has", "skill")]["w_r"],
             lp[("expert", "rev_includes", "team")]["w_r"]],
            axis=1)                                           # [32, 96]
        return jnp.concatenate([wl, wr], axis=1)              # [32, 224]

    W = jnp.concatenate([layer_w(params["conv1"]), layer_w(params["conv2"])], axis=1)  # [32, 448]
    return {"ab": AB, "w": W}


# ---------------------------------------------------------------------------
# Per-forward wrapper (jitted): embedding lookup + single fused pallas_call.
# ---------------------------------------------------------------------------
@jax.jit
def model_forward(packed, emb, node_id, edge_label_index):
    x = jnp.concatenate(
        [emb["expert"][node_id["expert"]],
         emb["skill"][node_id["skill"]],
         emb["team"][node_id["team"]]], axis=0)               # [36, 32]
    eli_t = edge_label_index.T.astype(jnp.int32)              # [E, 2]
    n_edges = edge_label_index.shape[1]

    out = pl.pallas_call(
        _fused_forward_kernel,
        out_shape=jax.ShapeDtypeStruct((n_edges, 1), jnp.float32),
        in_specs=[_VMEM, _VMEM, _VMEM, _VMEM],
        out_specs=_VMEM,
    )(x, packed["ab"], packed["w"], eli_t)
    return out[:, 0]


# ---------------------------------------------------------------------------
# Pure-JAX reference (plain per-edge-type hetero SAGE) for correctness check.
# ---------------------------------------------------------------------------
def reference_forward(params, data, adj):
    x = {nt: params["emb"][nt][data["node_id"][nt]] for nt in NODE_TYPES}
    for layer, relu in (("conv1", True), ("conv2", False)):
        new = {}
        for dst in NODE_TYPES:
            acc = jnp.zeros_like(x[dst])
            for et in INCOMING[dst]:
                src = et[0]
                p = params[layer][et]
                agg = adj[et] @ x[src]
                acc = acc + agg @ p["w_l"] + x[dst] @ p["w_r"] + p["b_l"]
            new[dst] = jnp.maximum(acc, 0.0) if relu else acc
        x = new
    eli = data["edge_label_index"]
    ef_tm = x["team"][eli[0]]
    ef_exp = x["expert"][eli[1]]
    return (ef_tm * ef_exp).sum(-1)


def init_params(key):
    params = {"emb": {}, "conv1": {}, "conv2": {}}
    for nt in NODE_TYPES:
        key, k = jax.random.split(key)
        params["emb"][nt] = jax.random.normal(k, (NUM_NODES[nt], HIDDEN), jnp.float32)
    for layer in ("conv1", "conv2"):
        for et in EDGE_TYPES:
            key, k1, k2, k3 = jax.random.split(key, 4)
            scale = 1.0 / jnp.sqrt(HIDDEN)
            params[layer][et] = {
                "w_l": jax.random.uniform(k1, (HIDDEN, HIDDEN), jnp.float32, -scale, scale),
                "w_r": jax.random.uniform(k2, (HIDDEN, HIDDEN), jnp.float32, -scale, scale),
                "b_l": jax.random.uniform(k3, (1, HIDDEN), jnp.float32, -scale, scale),
            }
    return params


# ---------------------------------------------------------------------------
if __name__ == "__main__":
    root = jax.random.PRNGKey(0)
    k_params, k_e1, k_e2, k_lab = jax.random.split(root, 4)

    params = init_params(k_params)

    # team -> expert edges and expert -> skill edges (+ reverse edge types)
    n_inc = 24
    inc_team = jax.random.randint(k_e1, (n_inc,), 0, NUM_TEAM, jnp.int32)
    inc_expert = jax.random.randint(jax.random.fold_in(k_e1, 1), (n_inc,), 0, NUM_EXPERT, jnp.int32)
    includes = jnp.stack([inc_team, inc_expert])            # [2, 24]

    n_has = 20
    has_expert = jax.random.randint(k_e2, (n_has,), 0, NUM_EXPERT, jnp.int32)
    has_skill = jax.random.randint(jax.random.fold_in(k_e2, 1), (n_has,), 0, NUM_SKILL, jnp.int32)
    has = jnp.stack([has_expert, has_skill])                # [2, 20]

    data = {
        "node_id": {nt: jnp.arange(NUM_NODES[nt], dtype=jnp.int32) for nt in NODE_TYPES},
        "edge_index": {
            ("team", "includes", "expert"): includes,
            ("expert", "rev_includes", "team"): includes[::-1],
            ("expert", "has", "skill"): has,
            ("skill", "rev_has", "expert"): has[::-1],
        },
        # edge_label_index for ('team','includes','expert'): row0=team, row1=expert
        "edge_label_index": jnp.stack([
            jax.random.randint(k_lab, (10,), 0, NUM_TEAM, jnp.int32),
            jax.random.randint(jax.random.fold_in(k_lab, 1), (10,), 0, NUM_EXPERT, jnp.int32),
        ]),
    }

    # Static (per-graph, per-checkpoint) packing: done ONCE, outside the
    # per-forward path.
    adj = {
        et: build_norm_adj(data["edge_index"][et], NUM_NODES[et[0]], NUM_NODES[et[2]])
        for et in EDGE_TYPES
    }
    packed = pack_static(params, adj)
    packed = jax.tree_util.tree_map(jax.block_until_ready, packed)

    pred = model_forward(packed, params["emb"], data["node_id"], data["edge_label_index"])
    jax.block_until_ready(pred)

    # Correctness vs. the plain per-edge-type hetero SAGE formulation.
    ref = reference_forward(params, data, adj)
    assert pred.shape == (10,) and pred.dtype == jnp.float32
    assert jnp.allclose(pred, ref, rtol=1e-4, atol=1e-4), (pred, ref)

    print("KERNEL_OK")
</pallas_src>

<mosaic_0001>
module attributes {stable_mosaic.version = 11 : i64} {
  func.func @_fused_forward_kernel(%arg0: memref<36x32xf32, #tpu.memory_space<vmem>>, %arg1: memref<80x68xf32, #tpu.memory_space<vmem>>, %arg2: memref<32x448xf32, #tpu.memory_space<vmem>>, %arg3: memref<10x2xi32, #tpu.memory_space<vmem>>, %arg4: memref<10x1xf32, #tpu.memory_space<vmem>>) attributes {dimension_semantics = [], scalar_prefetch = 0 : i64, scratch_operands = 0 : i64, tpu.core_type = #tpu.core_type<tc>} {
    %c0 = arith.constant 0 : index
    %c0_0 = arith.constant 0 : index
    %0 = vector.load %arg0[%c0, %c0_0] : memref<36x32xf32, #tpu.memory_space<vmem>>, vector<36x32xf32>
    %c0_1 = arith.constant 0 : index
    %c0_2 = arith.constant 0 : index
    %1 = vector.load %arg1[%c0_1, %c0_2] : memref<80x68xf32, #tpu.memory_space<vmem>>, vector<80x68xf32>
    %c0_3 = arith.constant 0 : index
    %c0_4 = arith.constant 0 : index
    %2 = vector.load %arg2[%c0_3, %c0_4] : memref<32x448xf32, #tpu.memory_space<vmem>>, vector<32x448xf32>
    %3 = vector.extract_strided_slice %1 {offsets = [0, 0], sizes = [80, 36], strides = [1, 1]} : vector<80x68xf32> to vector<80x36xf32>
    %4 = vector.extract_strided_slice %1 {offsets = [0, 36], sizes = [36, 32], strides = [1, 1]} : vector<80x68xf32> to vector<36x32xf32>
    %5 = vector.extract_strided_slice %1 {offsets = [40, 36], sizes = [36, 32], strides = [1, 1]} : vector<80x68xf32> to vector<36x32xf32>
    %6 = tpu.iota {dimensions = array<i32: 0>} : vector<36x1xi32>
    %c16_i32 = arith.constant 16 : i32
    %7 = vector.broadcast %c16_i32 : i32 to vector<36x1xi32>
    %8 = arith.cmpi slt, %6, %7 : vector<36x1xi32>
    %9 = arith.extui %8 : vector<36x1xi1> to vector<36x1xi32>
    %10 = arith.sitofp %9 : vector<36x1xi32> to vector<36x1xf32>
    %c16_i32_5 = arith.constant 16 : i32
    %11 = vector.broadcast %c16_i32_5 : i32 to vector<36x1xi32>
    %12 = arith.cmpi sge, %6, %11 : vector<36x1xi32>
    %c28_i32 = arith.constant 28 : i32
    %13 = vector.broadcast %c28_i32 : i32 to vector<36x1xi32>
    %14 = arith.cmpi slt, %6, %13 : vector<36x1xi32>
    %15 = arith.andi %12, %14 : vector<36x1xi1>
    %16 = arith.extui %15 : vector<36x1xi1> to vector<36x1xi32>
    %17 = arith.sitofp %16 : vector<36x1xi32> to vector<36x1xf32>
    %c28_i32_6 = arith.constant 28 : i32
    %18 = vector.broadcast %c28_i32_6 : i32 to vector<36x1xi32>
    %19 = arith.cmpi sge, %6, %18 : vector<36x1xi32>
    %20 = arith.extui %19 : vector<36x1xi1> to vector<36x1xi32>
    %21 = arith.sitofp %20 : vector<36x1xi32> to vector<36x1xf32>
    %22 = vector.extract_strided_slice %2 {offsets = [0, 0], sizes = [32, 128], strides = [1, 1]} : vector<32x448xf32> to vector<32x128xf32>
    %23 = vector.extract_strided_slice %2 {offsets = [0, 128], sizes = [32, 96], strides = [1, 1]} : vector<32x448xf32> to vector<32x96xf32>
    %cst = arith.constant dense<0.000000e+00> : vector<80x32xf32>
    %24 = tpu.matmul %3, %0, %cst {dimension_numbers = #tpu.dot_dimension_numbers<[1], [0], [0], [1], [0, 0, 1, 1], [], []>} : vector<80x36xf32>, vector<36x32xf32>, vector<80x32xf32> -> vector<80x32xf32>
    %cst_7 = arith.constant dense<0.000000e+00> : vector<80x128xf32>
    %25 = tpu.matmul %24, %22, %cst_7 {dimension_numbers = #tpu.dot_dimension_numbers<[1], [0], [0], [1], [0, 0, 1, 1], [], []>} : vector<80x32xf32>, vector<32x128xf32>, vector<80x128xf32> -> vector<80x128xf32>
    %cst_8 = arith.constant dense<0.000000e+00> : vector<36x96xf32>
    %26 = tpu.matmul %0, %23, %cst_8 {dimension_numbers = #tpu.dot_dimension_numbers<[1], [0], [0], [1], [0, 0, 1, 1], [], []>} : vector<36x32xf32>, vector<32x96xf32>, vector<36x96xf32> -> vector<36x96xf32>
    %27 = vector.extract_strided_slice %25 {offsets = [0, 0], sizes = [36, 96], strides = [1, 1]} : vector<80x128xf32> to vector<36x96xf32>
    %28 = vector.extract_strided_slice %27 {offsets = [0, 0], sizes = [36, 32], strides = [1, 1]} : vector<36x96xf32> to vector<36x32xf32>
    %29 = vector.broadcast %10 : vector<36x1xf32> to vector<36x32xf32>
    %30 = arith.mulf %28, %29 : vector<36x32xf32>
    %31 = vector.extract_strided_slice %27 {offsets = [0, 32], sizes = [36, 32], strides = [1, 1]} : vector<36x96xf32> to vector<36x32xf32>
    %32 = vector.broadcast %17 : vector<36x1xf32> to vector<36x32xf32>
    %33 = arith.mulf %31, %32 : vector<36x32xf32>
    %34 = arith.addf %30, %33 : vector<36x32xf32>
    %35 = vector.extract_strided_slice %27 {offsets = [0, 64], sizes = [36, 32], strides = [1, 1]} : vector<36x96xf32> to vector<36x32xf32>
    %36 = vector.broadcast %21 : vector<36x1xf32> to vector<36x32xf32>
    %37 = arith.mulf %35, %36 : vector<36x32xf32>
    %38 = arith.addf %34, %37 : vector<36x32xf32>
    %39 = vector.extract_strided_slice %25 {offsets = [40, 96], sizes = [36, 32], strides = [1, 1]} : vector<80x128xf32> to vector<36x32xf32>
    %40 = arith.addf %38, %39 : vector<36x32xf32>
    %41 = vector.extract_strided_slice %26 {offsets = [0, 0], sizes = [36, 32], strides = [1, 1]} : vector<36x96xf32> to vector<36x32xf32>
    %42 = vector.broadcast %10 : vector<36x1xf32> to vector<36x32xf32>
    %43 = arith.mulf %41, %42 : vector<36x32xf32>
    %44 = vector.extract_strided_slice %26 {offsets = [0, 32], sizes = [36, 32], strides = [1, 1]} : vector<36x96xf32> to vector<36x32xf32>
    %45 = vector.broadcast %17 : vector<36x1xf32> to vector<36x32xf32>
    %46 = arith.mulf %44, %45 : vector<36x32xf32>
    %47 = arith.addf %43, %46 : vector<36x32xf32>
    %48 = vector.extract_strided_slice %26 {offsets = [0, 64], sizes = [36, 32], strides = [1, 1]} : vector<36x96xf32> to vector<36x32xf32>
    %49 = vector.broadcast %21 : vector<36x1xf32> to vector<36x32xf32>
    %50 = arith.mulf %48, %49 : vector<36x32xf32>
    %51 = arith.addf %47, %50 : vector<36x32xf32>
    %52 = arith.addf %40, %51 : vector<36x32xf32>
    %53 = arith.addf %52, %4 : vector<36x32xf32>
    %cst_9 = arith.constant 0.000000e+00 : f32
    %54 = vector.broadcast %cst_9 : f32 to vector<36x32xf32>
    %55 = arith.maximumf %53, %54 : vector<36x32xf32>
    %56 = vector.extract_strided_slice %2 {offsets = [0, 224], sizes = [32, 128], strides = [1, 1]} : vector<32x448xf32> to vector<32x128xf32>
    %57 = vector.extract_strided_slice %2 {offsets = [0, 352], sizes = [32, 96], strides = [1, 1]} : vector<32x448xf32> to vector<32x96xf32>
    %cst_10 = arith.constant dense<0.000000e+00> : vector<80x32xf32>
    %58 = tpu.matmul %3, %55, %cst_10 {dimension_numbers = #tpu.dot_dimension_numbers<[1], [0], [0], [1], [0, 0, 1, 1], [], []>} : vector<80x36xf32>, vector<36x32xf32>, vector<80x32xf32> -> vector<80x32xf32>
    %cst_11 = arith.constant dense<0.000000e+00> : vector<80x128xf32>
    %59 = tpu.matmul %58, %56, %cst_11 {dimension_numbers = #tpu.dot_dimension_numbers<[1], [0], [0], [1], [0, 0, 1, 1], [], []>} : vector<80x32xf32>, vector<32x128xf32>, vector<80x128xf32> -> vector<80x128xf32>
    %cst_12 = arith.constant dense<0.000000e+00> : vector<36x96xf32>
    %60 = tpu.matmul %55, %57, %cst_12 {dimension_numbers = #tpu.dot_dimension_numbers<[1], [0], [0], [1], [0, 0, 1, 1], [], []>} : vector<36x32xf32>, vector<32x96xf32>, vector<36x96xf32> -> vector<36x96xf32>
    %61 = vector.extract_strided_slice %59 {offsets = [0, 0], sizes = [36, 96], strides = [1, 1]} : vector<80x128xf32> to vector<36x96xf32>
    %62 = vector.extract_strided_slice %61 {offsets = [0, 0], sizes = [36, 32], strides = [1, 1]} : vector<36x96xf32> to vector<36x32xf32>
    %63 = vector.broadcast %10 : vector<36x1xf32> to vector<36x32xf32>
    %64 = arith.mulf %62, %63 : vector<36x32xf32>
    %65 = vector.extract_strided_slice %61 {offsets = [0, 32], sizes = [36, 32], strides = [1, 1]} : vector<36x96xf32> to vector<36x32xf32>
    %66 = vector.broadcast %17 : vector<36x1xf32> to vector<36x32xf32>
    %67 = arith.mulf %65, %66 : vector<36x32xf32>
    %68 = arith.addf %64, %67 : vector<36x32xf32>
    %69 = vector.extract_strided_slice %61 {offsets = [0, 64], sizes = [36, 32], strides = [1, 1]} : vector<36x96xf32> to vector<36x32xf32>
    %70 = vector.broadcast %21 : vector<36x1xf32> to vector<36x32xf32>
    %71 = arith.mulf %69, %70 : vector<36x32xf32>
    %72 = arith.addf %68, %71 : vector<36x32xf32>
    %73 = vector.extract_strided_slice %59 {offsets = [40, 96], sizes = [36, 32], strides = [1, 1]} : vector<80x128xf32> to vector<36x32xf32>
    %74 = arith.addf %72, %73 : vector<36x32xf32>
    %75 = vector.extract_strided_slice %60 {offsets = [0, 0], sizes = [36, 32], strides = [1, 1]} : vector<36x96xf32> to vector<36x32xf32>
    %76 = vector.broadcast %10 : vector<36x1xf32> to vector<36x32xf32>
    %77 = arith.mulf %75, %76 : vector<36x32xf32>
    %78 = vector.extract_strided_slice %60 {offsets = [0, 32], sizes = [36, 32], strides = [1, 1]} : vector<36x96xf32> to vector<36x32xf32>
    %79 = vector.broadcast %17 : vector<36x1xf32> to vector<36x32xf32>
    %80 = arith.mulf %78, %79 : vector<36x32xf32>
    %81 = arith.addf %77, %80 : vector<36x32xf32>
    %82 = vector.extract_strided_slice %60 {offsets = [0, 64], sizes = [36, 32], strides = [1, 1]} : vector<36x96xf32> to vector<36x32xf32>
    %83 = vector.broadcast %21 : vector<36x1xf32> to vector<36x32xf32>
    %84 = arith.mulf %82, %83 : vector<36x32xf32>
    %85 = arith.addf %81, %84 : vector<36x32xf32>
    %86 = arith.addf %74, %85 : vector<36x32xf32>
    %87 = arith.addf %86, %5 : vector<36x32xf32>
    %c0_13 = arith.constant 0 : index
    %c0_14 = arith.constant 0 : index
    %88 = vector.load %arg3[%c0_13, %c0_14] : memref<10x2xi32, #tpu.memory_space<vmem>>, vector<10x2xi32>
    %89 = tpu.iota {dimensions = array<i32: 1>} : vector<10x36xi32>
    %90 = vector.extract_strided_slice %88 {offsets = [0, 0], sizes = [10, 1], strides = [1, 1]} : vector<10x2xi32> to vector<10x1xi32>
    %c28_i32_15 = arith.constant 28 : i32
    %91 = vector.broadcast %c28_i32_15 : i32 to vector<10x1xi32>
    %92 = arith.addi %90, %91 : vector<10x1xi32>
    %93 = vector.broadcast %92 : vector<10x1xi32> to vector<10x36xi32>
    %94 = arith.cmpi eq, %89, %93 : vector<10x36xi32>
    %95 = arith.extui %94 : vector<10x36xi1> to vector<10x36xi32>
    %96 = arith.sitofp %95 : vector<10x36xi32> to vector<10x36xf32>
    %97 = vector.extract_strided_slice %88 {offsets = [0, 1], sizes = [10, 1], strides = [1, 1]} : vector<10x2xi32> to vector<10x1xi32>
    %98 = vector.broadcast %97 : vector<10x1xi32> to vector<10x36xi32>
    %99 = arith.cmpi eq, %89, %98 : vector<10x36xi32>
    %100 = arith.extui %99 : vector<10x36xi1> to vector<10x36xi32>
    %101 = arith.sitofp %100 : vector<10x36xi32> to vector<10x36xf32>
    %cst_16 = arith.constant dense<0.000000e+00> : vector<10x32xf32>
    %102 = tpu.matmul %96, %87, %cst_16 {dimension_numbers = #tpu.dot_dimension_numbers<[1], [0], [0], [1], [0, 0, 1, 1], [], []>} : vector<10x36xf32>, vector<36x32xf32>, vector<10x32xf32> -> vector<10x32xf32>
    %cst_17 = arith.constant dense<0.000000e+00> : vector<10x32xf32>
    %103 = tpu.matmul %101, %87, %cst_17 {dimension_numbers = #tpu.dot_dimension_numbers<[1], [0], [0], [1], [0, 0, 1, 1], [], []>} : vector<10x36xf32>, vector<36x32xf32>, vector<10x32xf32> -> vector<10x32xf32>
    %104 = arith.mulf %102, %103 : vector<10x32xf32>
    %cst_18 = arith.constant dense<0.000000e+00> : vector<10xf32>
    %105 = vector.multi_reduction <add>, %104, %cst_18 [1] : vector<10x32xf32> to vector<10xf32>
    %106 = vector.shape_cast %105 : vector<10xf32> to vector<10x1xf32>
    %c0_19 = arith.constant 0 : index
    %c0_20 = arith.constant 0 : index
    %107 = vector.load %arg4[%c0_19, %c0_20] : memref<10x1xf32, #tpu.memory_space<vmem>>, vector<10x1xf32>
    tpu.vector_store %arg4[%c0_19, %c0_20], %106 {strides = array<i32>} : memref<10x1xf32, #tpu.memory_space<vmem>>, vector<10x1xf32>,
    return
  }
}

</mosaic_0001>

<llo_original>
// kernel: model_forward.1
$region0: #{model_forward.1}
  #allocation0 [shape = 'u32[]', space=smem, size = 0x4, offset = 0x4, fixed_abs, tag = 'smem constant byte address 0x4 - core index']
  #allocation1 [shape = 'u32[144,128]{1,0:T(1,128)}', space=vmem, size = 0x12000, scoped, tag = 'internal scratch']
  %s0 = inlined_call_operand.vmem [shape: f32[36,32], index: 0, kind: input, shape index: {}]
  %s1 = inlined_call_operand.vmem [shape: f32[80,68], index: 1, kind: input, shape index: {}]
  %s2 = inlined_call_operand.vmem [shape: f32[32,448], index: 2, kind: input, shape index: {}]
  %s3 = inlined_call_operand.vmem [shape: s32[10,2], index: 3, kind: input, shape index: {}]
  %s4 = inlined_call_operand.vmem [shape: f32[10,1], index: 4, kind: output, shape index: {}]
  %s5 = sld [smem:[#allocation0]]
  $region26: #{model_forward.1} parent=0
    _
  %s7 = ssub.s32 1, %s5
  %s8 = scalar_select 0, %s7, %s5
  // Predicated region
  $region2: #{model_forward.1} parent=0 // pred_check
    _
  $region3: #{model_forward.1} parent=0 // pred_check_branch
    %10 = sbr.rel (0) target = $region5
  $region4: #{model_forward.1} parent=0 // pred_region
    _
  $region5: #{model_forward.1} parent=0 // pred_fallthru
    _
  // Predicated region
  $region6: #{model_forward.1} parent=0 // pred_check
    _
  $region7: #{model_forward.1} parent=0 // pred_check_branch
    %12 = sbr.rel (0) target = $region9
  $region8: #{model_forward.1} parent=0 // pred_region
    _
  $region9: #{model_forward.1} parent=0 // pred_fallthru
    _
  // Predicated region
  $region10: #{model_forward.1} parent=0 // pred_check
    _
  $region11: #{model_forward.1} parent=0 // pred_check_branch
    %14 = sbr.rel (0) target = $region13
  $region12: #{model_forward.1} parent=0 // pred_region
    _
  $region13: #{model_forward.1} parent=0 // pred_fallthru
    _
  // Predicated region
  $region14: #{model_forward.1} parent=0 // pred_check
    _
  $region15: #{model_forward.1} parent=0 // pred_check_branch
    %16 = sbr.rel (0) target = $region17
  $region16: #{model_forward.1} parent=0 // pred_region
    _
  $region17: #{model_forward.1} parent=0 // pred_fallthru
    _
  %v17 = vld [vmem:[%s0] sm:$0xff]
  %v18 = vld [vmem:[%s0 + $0x8] sm:$0xff]
  %v19 = vld [vmem:[%s0 + $0x10] sm:$0xff]
  %v20 = vld [vmem:[%s0 + $0x18] sm:$0xff]
  %v21 = vld [vmem:[%s0 + $0x20] sm:$0xf]
  %v22 = vld [vmem:[%s1] sm:$0xff]
  %v23 = vld [vmem:[%s1 + $0x8] sm:$0xff]
  %v24 = vld [vmem:[%s1 + $0x10] sm:$0xff]
  %v25 = vld [vmem:[%s1 + $0x18] sm:$0xff]
  %v26 = vld [vmem:[%s1 + $0x20] sm:$0xff]
  %v27 = vld [vmem:[%s1 + $0x28] sm:$0xff]
  %v28 = vld [vmem:[%s1 + $0x30] sm:$0xff]
  %v29 = vld [vmem:[%s1 + $0x38] sm:$0xff]
  %v30 = vld [vmem:[%s1 + $0x40] sm:$0xff]
  %v31 = vld [vmem:[%s1 + $0x48] sm:$0xff]
  %v32 = vld [vmem:[%s2] sm:$0xff]
  %v33 = vld [vmem:[%s2 + $0x8] sm:$0xff]
  %v34 = vld [vmem:[%s2 + $0x10] sm:$0xff]
  %v35 = vld [vmem:[%s2 + $0x18] sm:$0xff]
  %v36 = vld [vmem:[%s2 + $0x20] sm:$0xff]
  %v37 = vld [vmem:[%s2 + $0x28] sm:$0xff]
  %v38 = vld [vmem:[%s2 + $0x30] sm:$0xff]
  %v39 = vld [vmem:[%s2 + $0x38] sm:$0xff]
  %v40 = vld [vmem:[%s2 + $0x40] sm:$0xff]
  %v41 = vld [vmem:[%s2 + $0x48] sm:$0xff]
  %v42 = vld [vmem:[%s2 + $0x50] sm:$0xff]
  %v43 = vld [vmem:[%s2 + $0x58] sm:$0xff]
  %v44 = vld [vmem:[%s2 + $0x60] sm:$0xff]
  %v45 = vld [vmem:[%s2 + $0x68] sm:$0xff]
  %v46 = vld [vmem:[%s2 + $0x70] sm:$0xff]
  %v47 = vld [vmem:[%s2 + $0x78] sm:$0xff]
  %v48 = vlaneseq
  %v49 = vshrl.u32 %v48, 7
  %v50 = vadd.s32 %v49, 8
  %v51 = vadd.s32 %v49, 16
  %v52 = vadd.s32 %v49, 24
  %v53 = vadd.s32 %v49, 32
  %vm54 = vcmp.lt.s32.totalorder %v49, 16
  %vm55 = vcmp.lt.s32.totalorder %v50, 16
  %vm56 = vcmp.lt.s32.totalorder %v51, 16
  %vm57 = vcmp.lt.s32.totalorder %v52, 16
  %vm58 = vcmp.lt.s32.totalorder %v53, 16
  %v59 = vsel %vm54, 1, 0
  %v60 = vsel %vm55, 1, 0
  %v61 = vsel %vm56, 1, 0
  %v62 = vsel %vm57, 1, 0
  %v63 = vsel %vm58, 1, 0
  %v64 = vcvt.s32.f32 %v59
  %v65 = vcvt.s32.f32 %v60
  %v66 = vcvt.s32.f32 %v61
  %v67 = vcvt.s32.f32 %v62
  %v68 = vcvt.s32.f32 %v63
  %vm69 = vcmp.ge.s32.totalorder %v49, 16
  %vm70 = vcmp.ge.s32.totalorder %v50, 16
  %vm71 = vcmp.ge.s32.totalorder %v51, 16
  %vm72 = vcmp.ge.s32.totalorder %v52, 16
  %vm73 = vcmp.ge.s32.totalorder %v53, 16
  %vm74 = vcmp.lt.s32.totalorder %v49, 28
  %vm75 = vcmp.lt.s32.totalorder %v50, 28
  %vm76 = vcmp.lt.s32.totalorder %v51, 28
  %vm77 = vcmp.lt.s32.totalorder %v52, 28
  %vm78 = vcmp.lt.s32.totalorder %v53, 28
  %vm79 = vmand %vm69, %vm74
  %vm80 = vmand %vm70, %vm75
  %vm81 = vmand %vm71, %vm76
  %vm82 = vmand %vm72, %vm77
  %vm83 = vmand %vm73, %vm78
  %v84 = vsel %vm79, 1, 0
  %v85 = vsel %vm80, 1, 0
  %v86 = vsel %vm81, 1, 0
  %v87 = vsel %vm82, 1, 0
  %v88 = vsel %vm83, 1, 0
  %v89 = vcvt.s32.f32 %v84
  %v90 = vcvt.s32.f32 %v85
  %v91 = vcvt.s32.f32 %v86
  %v92 = vcvt.s32.f32 %v87
  %v93 = vcvt.s32.f32 %v88
  %vm94 = vcmp.ge.s32.totalorder %v49, 28
  %vm95 = vcmp.ge.s32.totalorder %v50, 28
  %vm96 = vcmp.ge.s32.totalorder %v51, 28
  %vm97 = vcmp.ge.s32.totalorder %v52, 28
  %vm98 = vcmp.ge.s32.totalorder %v53, 28
  %v99 = vsel %vm94, 1, 0
  %v100 = vsel %vm95, 1, 0
  %v101 = vsel %vm96, 1, 0
  %v102 = vsel %vm97, 1, 0
  %v103 = vsel %vm98, 1, 0
  %v104 = vcvt.s32.f32 %v99
  %v105 = vcvt.s32.f32 %v100
  %v106 = vcvt.s32.f32 %v101
  %v107 = vcvt.s32.f32 %v102
  %v108 = vcvt.s32.f32 %v103
  %vm109 = vcmask 293888
  %v111 = vsel %vm109, %v22, 0
  %v114 = vsel %vm109, %v23, 0
  %v117 = vsel %vm109, %v24, 0
  %v120 = vsel %vm109, %v25, 0
  %v123 = vsel %vm109, %v26, 0
  %v126 = vsel %vm109, %v27, 0
  %v129 = vsel %vm109, %v28, 0
  %v132 = vsel %vm109, %v29, 0
  %v135 = vsel %vm109, %v30, 0
  %v138 = vsel %vm109, %v31, 0
  %vm140 = vcmask 1043456
  %v142 = vsel %vm140, %v21, 0
  %144 = vmatprep.subr.mxu0 0.0
  %145 = vmatpush1.msra.mxu0 0.0
  %146 = vmatprep.subr.mxu0 0.0
  %147 = vmatpush1.msra.mxu0 0.0
  %148 = vmatprep.subr.mxu0 0.0
  %149 = vmatpush1.msra.mxu0 0.0
  %150 = vmatprep.subr.mxu0 0.0
  %151 = vmatpush1.msra.mxu0 0.0
  %152 = vmatprep.subr.mxu0 0.0
  %153 = vmatpush1.msra.mxu0 0.0
  %154 = vmatprep.subr.mxu0 0.0
  %155 = vmatpush1.msra.mxu0 0.0
  %156 = vmatprep.subr.mxu0 0.0
  %157 = vmatpush1.msra.mxu0 0.0
  %158 = vmatprep.subr.mxu0 0.0
  %159 = vmatpush1.msra.mxu0 0.0
  %160 = vmatprep.subr.mxu0 0.0
  %161 = vmatpush1.msra.mxu0 0.0
  %162 = vmatprep.subr.mxu0 0.0
  %163 = vmatpush1.msra.mxu0 0.0
  %164 = vmatprep.subr.mxu0 0.0
  %165 = vmatpush1.msra.mxu0 0.0
  %166 = vmatprep.subr.mxu0 0.0
  %167 = vmatpush1.msra.mxu0 %v142
  %168 = vmatprep.subr.mxu0 0.0
  %169 = vmatpush1.msra.mxu0 %v20
  %170 = vmatprep.subr.mxu0 0.0
  %171 = vmatpush1.msra.mxu0 %v19
  %172 = vmatprep.subr.mxu0 0.0
  %173 = vmatpush1.msra.mxu0 %v18
  %174 = vmatprep.subr.mxu0 0.0
  %175 = vmatpush1.msra.mxu0 %v17
  %176 = vmatprep.subr.mxu0 0.0
  %177 = vmatpush2.msra.mxu0 0.0
  %178 = vmatprep.subr.mxu0 0.0
  %179 = vmatpush2.msra.mxu0 0.0
  %180 = vmatprep.subr.mxu0 0.0
  %181 = vmatpush2.msra.mxu0 0.0
  %182 = vmatprep.subr.mxu0 0.0
  %183 = vmatpush2.msra.mxu0 0.0
  %184 = vmatprep.subr.mxu0 0.0
  %185 = vmatpush2.msra.mxu0 0.0
  %186 = vmatprep.subr.mxu0 0.0
  %187 = vmatpush2.msra.mxu0 0.0
  %188 = vmatprep.subr.mxu0 0.0
  %189 = vmatpush2.msra.mxu0 0.0
  %190 = vmatprep.subr.mxu0 0.0
  %191 = vmatpush2.msra.mxu0 0.0
  %192 = vmatprep.subr.mxu0 0.0
  %193 = vmatpush2.msra.mxu0 0.0
  %194 = vmatprep.subr.mxu0 0.0
  %195 = vmatpush2.msra.mxu0 0.0
  %196 = vmatprep.subr.mxu0 0.0
  %197 = vmatpush2.msra.mxu0 0.0
  %198 = vmatprep.subr.mxu0 0.0
  %199 = vmatpush2.msra.mxu0 0.0
  %200 = vmatprep.subr.mxu0 0.0
  %201 = vmatpush2.msra.mxu0 0.0
  %202 = vmatprep.subr.mxu0 0.0
  %203 = vmatpush2.msra.mxu0 0.0
  %204 = vmatprep.subr.mxu0 0.0
  %205 = vmatpush2.msra.mxu0 0.0
  %206 = vmatprep.subr.mxu0 0.0
  %207 = vmatpush2.msra.mxu0 0.0
  %208 = vmatprep.mubr.f32.mxu0 0.0
  %209 = vmatmul.mubr.f32.gmra.mxu0 %v111
  %v210 = vpop.f32.mrf.mxu0
  %v211 = vadd.f32 0.0, %v210
  %v212 = vpop.f32.mrf.mxu0
  %213 = vmatprep.mubr.f32.mxu0 0.0
  %214 = vmatmul.mubr.f32.gmra.mxu0 %v114
  %v215 = vpop.f32.mrf.mxu0
  %v216 = vadd.f32 0.0, %v215
  %v217 = vpop.f32.mrf.mxu0
  %218 = vmatprep.mubr.f32.mxu0 0.0
  %219 = vmatmul.mubr.f32.gmra.mxu0 %v117
  %v220 = vpop.f32.mrf.mxu0
  %v221 = vadd.f32 0.0, %v220
  %v222 = vpop.f32.mrf.mxu0
  %223 = vmatprep.mubr.f32.mxu0 0.0
  %224 = vmatmul.mubr.f32.gmra.mxu0 %v120
  %v225 = vpop.f32.mrf.mxu0
  %v226 = vadd.f32 0.0, %v225
  %v227 = vpop.f32.mrf.mxu0
  %228 = vmatprep.mubr.f32.mxu0 0.0
  %229 = vmatmul.mubr.f32.gmra.mxu0 %v123
  %v230 = vpop.f32.mrf.mxu0
  %v231 = vadd.f32 0.0, %v230
  %v232 = vpop.f32.mrf.mxu0
  %233 = vmatprep.mubr.f32.mxu0 0.0
  %234 = vmatmul.mubr.f32.gmra.mxu0 %v126
  %v235 = vpop.f32.mrf.mxu0
  %v236 = vadd.f32 0.0, %v235
  %v237 = vpop.f32.mrf.mxu0
  %238 = vmatprep.mubr.f32.mxu0 0.0
  %239 = vmatmul.mubr.f32.gmra.mxu0 %v129
  %v240 = vpop.f32.mrf.mxu0
  %v241 = vadd.f32 0.0, %v240
  %v242 = vpop.f32.mrf.mxu0
  %243 = vmatprep.mubr.f32.mxu0 0.0
  %244 = vmatmul.mubr.f32.gmra.mxu0 %v132
  %v245 = vpop.f32.mrf.mxu0
  %v246 = vadd.f32 0.0, %v245
  %v247 = vpop.f32.mrf.mxu0
  %248 = vmatprep.mubr.f32.mxu0 0.0
  %249 = vmatmul.mubr.f32.gmra.mxu0 %v135
  %v250 = vpop.f32.mrf.mxu0
  %v251 = vadd.f32 0.0, %v250
  %v252 = vpop.f32.mrf.mxu0
  %253 = vmatprep.mubr.f32.mxu0 0.0
  %254 = vmatmul.mubr.f32.gmra.mxu0 %v138
  %v255 = vpop.f32.mrf.mxu0
  %v256 = vadd.f32 0.0, %v255
  %v257 = vpop.f32.mrf.mxu0
  %258 = vdwg.mxu0
  %vm259 = vcmask 261120
  %v261 = vsel %vm259, %v211, 0
  %v264 = vsel %vm259, %v216, 0
  %v267 = vsel %vm259, %v221, 0
  %v270 = vsel %vm259, %v226, 0
  %v273 = vsel %vm259, %v231, 0
  %v276 = vsel %vm259, %v236, 0
  %v279 = vsel %vm259, %v241, 0
  %v282 = vsel %vm259, %v246, 0
  %v285 = vsel %vm259, %v251, 0
  %v288 = vsel %vm259, %v256, 0
  %290 = vmatprep.subr.mxu0 0.0
  %291 = vmatpush1.msra.mxu0 0.0
  %292 = vmatprep.subr.mxu0 0.0
  %293 = vmatpush1.msra.mxu0 0.0
  %294 = vmatprep.subr.mxu0 0.0
  %295 = vmatpush1.msra.mxu0 0.0
  %296 = vmatprep.subr.mxu0 0.0
  %297 = vmatpush1.msra.mxu0 0.0
  %298 = vmatprep.subr.mxu0 0.0
  %299 = vmatpush1.msra.mxu0 0.0
  %300 = vmatprep.subr.mxu0 0.0
  %301 = vmatpush1.msra.mxu0 0.0
  %302 = vmatprep.subr.mxu0 0.0
  %303 = vmatpush1.msra.mxu0 0.0
  %304 = vmatprep.subr.mxu0 0.0
  %305 = vmatpush1.msra.mxu0 0.0
  %306 = vmatprep.subr.mxu0 0.0
  %307 = vmatpush1.msra.mxu0 0.0
  %308 = vmatprep.subr.mxu0 0.0
  %309 = vmatpush1.msra.mxu0 0.0
  %310 = vmatprep.subr.mxu0 0.0
  %311 = vmatpush1.msra.mxu0 0.0
  %312 = vmatprep.subr.mxu0 0.0
  %313 = vmatpush1.msra.mxu0 0.0
  %314 = vmatprep.subr.mxu0 0.0
  %315 = vmatpush1.msra.mxu0 %v44
  %316 = vmatprep.subr.mxu0 0.0
  %317 = vmatpush1.msra.mxu0 %v40
  %318 = vmatprep.subr.mxu0 0.0
  %319 = vmatpush1.msra.mxu0 %v36
  %320 = vmatprep.subr.mxu0 0.0
  %321 = vmatpush1.msra.mxu0 %v32
  %322 = vmatprep.subr.mxu0 0.0
  %323 = vmatpush2.msra.mxu0 0.0
  %324 = vmatprep.subr.mxu0 0.0
  %325 = vmatpush2.msra.mxu0 0.0
  %326 = vmatprep.subr.mxu0 0.0
  %327 = vmatpush2.msra.mxu0 0.0
  %328 = vmatprep.subr.mxu0 0.0
  %329 = vmatpush2.msra.mxu0 0.0
  %330 = vmatprep.subr.mxu0 0.0
  %331 = vmatpush2.msra.mxu0 0.0
  %332 = vmatprep.subr.mxu0 0.0
  %333 = vmatpush2.msra.mxu0 0.0
  %334 = vmatprep.subr.mxu0 0.0
  %335 = vmatpush2.msra.mxu0 0.0
  %336 = vmatprep.subr.mxu0 0.0
  %337 = vmatpush2.msra.mxu0 0.0
  %338 = vmatprep.subr.mxu0 0.0
  %339 = vmatpush2.msra.mxu0 0.0
  %340 = vmatprep.subr.mxu0 0.0
  %341 = vmatpush2.msra.mxu0 0.0
  %342 = vmatprep.subr.mxu0 0.0
  %343 = vmatpush2.msra.mxu0 0.0
  %344 = vmatprep.subr.mxu0 0.0
  %345 = vmatpush2.msra.mxu0 0.0
  %346 = vmatprep.subr.mxu0 0.0
  %347 = vmatpush2.msra.mxu0 0.0
  %348 = vmatprep.subr.mxu0 0.0
  %349 = vmatpush2.msra.mxu0 0.0
  %350 = vmatprep.subr.mxu0 0.0
  %351 = vmatpush2.msra.mxu0 0.0
  %352 = vmatprep.subr.mxu0 0.0
  %353 = vmatpush2.msra.mxu0 0.0
  %354 = vmatprep.mubr.f32.mxu0 0.0
  %355 = vmatmul.mubr.f32.gmra.mxu0 %v261
  %v356 = vpop.f32.mrf.mxu0
  %v357 = vadd.f32 0.0, %v356
  %v358 = vpop.f32.mrf.mxu0
  %359 = vmatprep.mubr.f32.mxu0 0.0
  %360 = vmatmul.mubr.f32.gmra.mxu0 %v264
  %v361 = vpop.f32.mrf.mxu0
  %v362 = vadd.f32 0.0, %v361
  %v363 = vpop.f32.mrf.mxu0
  %364 = vmatprep.mubr.f32.mxu0 0.0
  %365 = vmatmul.mubr.f32.gmra.mxu0 %v267
  %v366 = vpop.f32.mrf.mxu0
  %v367 = vadd.f32 0.0, %v366
  %v368 = vpop.f32.mrf.mxu0
  %369 = vmatprep.mubr.f32.mxu0 0.0
  %370 = vmatmul.mubr.f32.gmra.mxu0 %v270
  %v371 = vpop.f32.mrf.mxu0
  %v372 = vadd.f32 0.0, %v371
  %v373 = vpop.f32.mrf.mxu0
  %374 = vmatprep.mubr.f32.mxu0 0.0
  %375 = vmatmul.mubr.f32.gmra.mxu0 %v273
  %v376 = vpop.f32.mrf.mxu0
  %v377 = vadd.f32 0.0, %v376
  %v378 = vpop.f32.mrf.mxu0
  %379 = vmatprep.mubr.f32.mxu0 0.0
  %380 = vmatmul.mubr.f32.gmra.mxu0 %v276
  %v381 = vpop.f32.mrf.mxu0
  %v382 = vadd.f32 0.0, %v381
  %v383 = vpop.f32.mrf.mxu0
  %384 = vmatprep.mubr.f32.mxu0 0.0
  %385 = vmatmul.mubr.f32.gmra.mxu0 %v279
  %v386 = vpop.f32.mrf.mxu0
  %v387 = vadd.f32 0.0, %v386
  %v388 = vpop.f32.mrf.mxu0
  %389 = vmatprep.mubr.f32.mxu0 0.0
  %390 = vmatmul.mubr.f32.gmra.mxu0 %v282
  %v391 = vpop.f32.mrf.mxu0
  %v392 = vadd.f32 0.0, %v391
  %v393 = vpop.f32.mrf.mxu0
  %394 = vmatprep.mubr.f32.mxu0 0.0
  %395 = vmatmul.mubr.f32.gmra.mxu0 %v285
  %v396 = vpop.f32.mrf.mxu0
  %v397 = vadd.f32 0.0, %v396
  %v398 = vpop.f32.mrf.mxu0
  %399 = vmatprep.mubr.f32.mxu0 0.0
  %400 = vmatmul.mubr.f32.gmra.mxu0 %v288
  %v401 = vpop.f32.mrf.mxu0
  %v402 = vadd.f32 0.0, %v401
  %v403 = vpop.f32.mrf.mxu0
  %404 = vdwg.mxu0
  %v406 = vsel %vm259, %v17, 0
  %v409 = vsel %vm259, %v18, 0
  %v412 = vsel %vm259, %v19, 0
  %v415 = vsel %vm259, %v20, 0
  %v417 = vsel %vm259, %v21, 0
  %419 = vmatprep.subr.mxu0 0.0
  %420 = vmatpush1.msra.mxu0 0.0
  %421 = vmatprep.subr.mxu0 0.0
  %422 = vmatpush1.msra.mxu0 0.0
  %423 = vmatprep.subr.mxu0 0.0
  %424 = vmatpush1.msra.mxu0 0.0
  %425 = vmatprep.subr.mxu0 0.0
  %426 = vmatpush1.msra.mxu0 0.0
  %427 = vmatprep.subr.mxu0 0.0
  %428 = vmatpush1.msra.mxu0 0.0
  %429 = vmatprep.subr.mxu0 0.0
  %430 = vmatpush1.msra.mxu0 0.0
  %431 = vmatprep.subr.mxu0 0.0
  %432 = vmatpush1.msra.mxu0 0.0
  %433 = vmatprep.subr.mxu0 0.0
  %434 = vmatpush1.msra.mxu0 0.0
  %435 = vmatprep.subr.mxu0 0.0
  %436 = vmatpush1.msra.mxu0 0.0
  %437 = vmatprep.subr.mxu0 0.0
  %438 = vmatpush1.msra.mxu0 0.0
  %439 = vmatprep.subr.mxu0 0.0
  %440 = vmatpush1.msra.mxu0 0.0
  %441 = vmatprep.subr.mxu0 0.0
  %442 = vmatpush1.msra.mxu0 0.0
  %443 = vmatprep.subr.mxu0 0.0
  %444 = vmatpush1.msra.mxu0 %v45
  %445 = vmatprep.subr.mxu0 0.0
  %446 = vmatpush1.msra.mxu0 %v41
  %447 = vmatprep.subr.mxu0 0.0
  %448 = vmatpush1.msra.mxu0 %v37
  %449 = vmatprep.subr.mxu0 0.0
  %450 = vmatpush1.msra.mxu0 %v33
  %451 = vmatprep.subr.mxu0 0.0
  %452 = vmatpush2.msra.mxu0 0.0
  %453 = vmatprep.subr.mxu0 0.0
  %454 = vmatpush2.msra.mxu0 0.0
  %455 = vmatprep.subr.mxu0 0.0
  %456 = vmatpush2.msra.mxu0 0.0
  %457 = vmatprep.subr.mxu0 0.0
  %458 = vmatpush2.msra.mxu0 0.0
  %459 = vmatprep.subr.mxu0 0.0
  %460 = vmatpush2.msra.mxu0 0.0
  %461 = vmatprep.subr.mxu0 0.0
  %462 = vmatpush2.msra.mxu0 0.0
  %463 = vmatprep.subr.mxu0 0.0
  %464 = vmatpush2.msra.mxu0 0.0
  %465 = vmatprep.subr.mxu0 0.0
  %466 = vmatpush2.msra.mxu0 0.0
  %467 = vmatprep.subr.mxu0 0.0
  %468 = vmatpush2.msra.mxu0 0.0
  %469 = vmatprep.subr.mxu0 0.0
  %470 = vmatpush2.msra.mxu0 0.0
  %471 = vmatprep.subr.mxu0 0.0
  %472 = vmatpush2.msra.mxu0 0.0
  %473 = vmatprep.subr.mxu0 0.0
  %474 = vmatpush2.msra.mxu0 0.0
  %475 = vmatprep.subr.mxu0 0.0
  %476 = vmatpush2.msra.mxu0 0.0
  %477 = vmatprep.subr.mxu0 0.0
  %478 = vmatpush2.msra.mxu0 0.0
  %479 = vmatprep.subr.mxu0 0.0
  %480 = vmatpush2.msra.mxu0 0.0
  %481 = vmatprep.subr.mxu0 0.0
  %482 = vmatpush2.msra.mxu0 0.0
  %483 = vmatprep.mubr.f32.mxu0 0.0
  %484 = vmatmul.mubr.f32.gmra.mxu0 %v406
  %v485 = vpop.f32.mrf.mxu0
  %v486 = vadd.f32 0.0, %v485
  %v487 = vpop.f32.mrf.mxu0
  %488 = vmatprep.mubr.f32.mxu0 0.0
  %489 = vmatmul.mubr.f32.gmra.mxu0 %v409
  %v490 = vpop.f32.mrf.mxu0
  %v491 = vadd.f32 0.0, %v490
  %v492 = vpop.f32.mrf.mxu0
  %493 = vmatprep.mubr.f32.mxu0 0.0
  %494 = vmatmul.mubr.f32.gmra.mxu0 %v412
  %v495 = vpop.f32.mrf.mxu0
  %v496 = vadd.f32 0.0, %v495
  %v497 = vpop.f32.mrf.mxu0
  %498 = vmatprep.mubr.f32.mxu0 0.0
  %499 = vmatmul.mubr.f32.gmra.mxu0 %v415
  %v500 = vpop.f32.mrf.mxu0
  %v501 = vadd.f32 0.0, %v500
  %v502 = vpop.f32.mrf.mxu0
  %503 = vmatprep.mubr.f32.mxu0 0.0
  %504 = vmatmul.mubr.f32.gmra.mxu0 %v417
  %v505 = vpop.f32.mrf.mxu0
  %v506 = vadd.f32 0.0, %v505
  %v507 = vpop.f32.mrf.mxu0
  %508 = vdwg.mxu0
  %v509 = vmul.f32 %v357, %v64
  %v510 = vmul.f32 %v362, %v65
  %v511 = vmul.f32 %v367, %v66
  %v512 = vmul.f32 %v372, %v67
  %v513 = vmul.f32 %v377, %v68
  %v514 = vmul.f32 %v357, %v89
  %v515 = vmul.f32 %v362, %v90
  %v516 = vmul.f32 %v367, %v91
  %v517 = vmul.f32 %v372, %v92
  %v518 = vmul.f32 %v377, %v93
  %524 = vrot.lane.b32.xlu0 %v514, 96
  %v525 = vpop.permute.xlu0 %524
  %526 = vrot.lane.b32.xlu0 %v515, 96
  %v527 = vpop.permute.xlu0 %526
  %528 = vrot.lane.b32.xlu0 %v516, 96
  %v529 = vpop.permute.xlu0 %528
  %530 = vrot.lane.b32.xlu0 %v517, 96
  %v531 = vpop.permute.xlu0 %530
  %532 = vrot.lane.b32.xlu0 %v518, 96
  %v533 = vpop.permute.xlu0 %532
  %v539 = vadd.f32 %v509, %v525
  %v540 = vadd.f32 %v510, %v527
  %v541 = vadd.f32 %v511, %v529
  %v542 = vadd.f32 %v512, %v531
  %v543 = vadd.f32 %v513, %v533
  %v544 = vmul.f32 %v357, %v104
  %v545 = vmul.f32 %v362, %v105
  %v546 = vmul.f32 %v367, %v106
  %v547 = vmul.f32 %v372, %v107
  %v548 = vmul.f32 %v377, %v108
  %554 = vrot.lane.b32.xlu0 %v544, 64
  %v555 = vpop.permute.xlu0 %554
  %556 = vrot.lane.b32.xlu0 %v545, 64
  %v557 = vpop.permute.xlu0 %556
  %558 = vrot.lane.b32.xlu0 %v546, 64
  %v559 = vpop.permute.xlu0 %558
  %560 = vrot.lane.b32.xlu0 %v547, 64
  %v561 = vpop.permute.xlu0 %560
  %562 = vrot.lane.b32.xlu0 %v548, 64
  %v563 = vpop.permute.xlu0 %562
  %v569 = vadd.f32 %v539, %v555
  %v570 = vadd.f32 %v540, %v557
  %v571 = vadd.f32 %v541, %v559
  %v572 = vadd.f32 %v542, %v561
  %v573 = vadd.f32 %v543, %v563
  %579 = vrot.lane.b32.xlu0 %v382, 32
  %v580 = vpop.permute.xlu0 %579
  %581 = vrot.lane.b32.xlu0 %v387, 32
  %v582 = vpop.permute.xlu0 %581
  %583 = vrot.lane.b32.xlu0 %v392, 32
  %v584 = vpop.permute.xlu0 %583
  %585 = vrot.lane.b32.xlu0 %v397, 32
  %v586 = vpop.permute.xlu0 %585
  %587 = vrot.lane.b32.xlu0 %v402, 32
  %v588 = vpop.permute.xlu0 %587
  %v594 = vadd.f32 %v569, %v580
  %v595 = vadd.f32 %v570, %v582
  %v596 = vadd.f32 %v571, %v584
  %v597 = vadd.f32 %v572, %v586
  %v598 = vadd.f32 %v573, %v588
  %v599 = vmul.f32 %v486, %v64
  %v600 = vmul.f32 %v491, %v65
  %v601 = vmul.f32 %v496, %v66
  %v602 = vmul.f32 %v501, %v67
  %v603 = vmul.f32 %v506, %v68
  %v604 = vmul.f32 %v486, %v89
  %v605 = vmul.f32 %v491, %v90
  %v606 = vmul.f32 %v496, %v91
  %v607 = vmul.f32 %v501, %v92
  %v608 = vmul.f32 %v506, %v93
  %614 = vrot.lane.b32.xlu0 %v604, 96
  %v615 = vpop.permute.xlu0 %614
  %616 = vrot.lane.b32.xlu0 %v605, 96
  %v617 = vpop.permute.xlu0 %616
  %618 = vrot.lane.b32.xlu0 %v606, 96
  %v619 = vpop.permute.xlu0 %618
  %620 = vrot.lane.b32.xlu0 %v607, 96
  %v621 = vpop.permute.xlu0 %620
  %622 = vrot.lane.b32.xlu0 %v608, 96
  %v623 = vpop.permute.xlu0 %622
  %v629 = vadd.f32 %v599, %v615
  %v630 = vadd.f32 %v600, %v617
  %v631 = vadd.f32 %v601, %v619
  %v632 = vadd.f32 %v602, %v621
  %v633 = vadd.f32 %v603, %v623
  %v634 = vmul.f32 %v486, %v104
  %v635 = vmul.f32 %v491, %v105
  %v636 = vmul.f32 %v496, %v106
  %v637 = vmul.f32 %v501, %v107
  %v638 = vmul.f32 %v506, %v108
  %644 = vrot.lane.b32.xlu0 %v634, 64
  %v645 = vpop.permute.xlu0 %644
  %646 = vrot.lane.b32.xlu0 %v635, 64
  %v647 = vpop.permute.xlu0 %646
  %648 = vrot.lane.b32.xlu0 %v636, 64
  %v649 = vpop.permute.xlu0 %648
  %650 = vrot.lane.b32.xlu0 %v637, 64
  %v651 = vpop.permute.xlu0 %650
  %652 = vrot.lane.b32.xlu0 %v638, 64
  %v653 = vpop.permute.xlu0 %652
  %v659 = vadd.f32 %v629, %v645
  %v660 = vadd.f32 %v630, %v647
  %v661 = vadd.f32 %v631, %v649
  %v662 = vadd.f32 %v632, %v651
  %v663 = vadd.f32 %v633, %v653
  %v664 = vadd.f32 %v594, %v659
  %v665 = vadd.f32 %v595, %v660
  %v666 = vadd.f32 %v596, %v661
  %v667 = vadd.f32 %v597, %v662
  %v668 = vadd.f32 %v598, %v663
  %669 = vrot.lane.b32.xlu0 %v22, 92
  %v670 = vpop.permute.xlu0 %669
  %671 = vrot.lane.b32.xlu0 %v23, 92
  %v672 = vpop.permute.xlu0 %671
  %673 = vrot.lane.b32.xlu0 %v24, 92
  %v674 = vpop.permute.xlu0 %673
  %675 = vrot.lane.b32.xlu0 %v25, 92
  %v676 = vpop.permute.xlu0 %675
  %677 = vrot.lane.b32.xlu0 %v26, 92
  %v678 = vpop.permute.xlu0 %677
  %v684 = vadd.f32 %v664, %v670
  %v685 = vadd.f32 %v665, %v672
  %v686 = vadd.f32 %v666, %v674
  %v687 = vadd.f32 %v667, %v676
  %v688 = vadd.f32 %v668, %v678
  %v689 = vmax.f32 %v684, 0.0
  %v690 = vmax.f32 %v685, 0.0
  %v691 = vmax.f32 %v686, 0.0
  %v692 = vmax.f32 %v687, 0.0
  %v693 = vmax.f32 %v688, 0.0
  %v695 = vsel %vm140, %v693, 0
  %697 = vmatprep.subr.mxu0 0.0
  %698 = vmatpush1.msra.mxu0 0.0
  %699 = vmatprep.subr.mxu0 0.0
  %700 = vmatpush1.msra.mxu0 0.0
  %701 = vmatprep.subr.mxu0 0.0
  %702 = vmatpush1.msra.mxu0 0.0
  %703 = vmatprep.subr.mxu0 0.0
  %704 = vmatpush1.msra.mxu0 0.0
  %705 = vmatprep.subr.mxu0 0.0
  %706 = vmatpush1.msra.mxu0 0.0
  %707 = vmatprep.subr.mxu0 0.0
  %708 = vmatpush1.msra.mxu0 0.0
  %709 = vmatprep.subr.mxu0 0.0
  %710 = vmatpush1.msra.mxu0 0.0
  %711 = vmatprep.subr.mxu0 0.0
  %712 = vmatpush1.msra.mxu0 0.0
  %713 = vmatprep.subr.mxu0 0.0
  %714 = vmatpush1.msra.mxu0 0.0
  %715 = vmatprep.subr.mxu0 0.0
  %716 = vmatpush1.msra.mxu0 0.0
  %717 = vmatprep.subr.mxu0 0.0
  %718 = vmatpush1.msra.mxu0 0.0
  %719 = vmatprep.subr.mxu0 0.0
  %720 = vmatpush1.msra.mxu0 %v695
  %721 = vmatprep.subr.mxu0 0.0
  %722 = vmatpush1.msra.mxu0 %v692
  %723 = vmatprep.subr.mxu0 0.0
  %724 = vmatpush1.msra.mxu0 %v691
  %725 = vmatprep.subr.mxu0 0.0
  %726 = vmatpush1.msra.mxu0 %v690
  %727 = vmatprep.subr.mxu0 0.0
  %728 = vmatpush1.msra.mxu0 %v689
  %729 = vmatprep.subr.mxu0 0.0
  %730 = vmatpush2.msra.mxu0 0.0
  %731 = vmatprep.subr.mxu0 0.0
  %732 = vmatpush2.msra.mxu0 0.0
  %733 = vmatprep.subr.mxu0 0.0
  %734 = vmatpush2.msra.mxu0 0.0
  %735 = vmatprep.subr.mxu0 0.0
  %736 = vmatpush2.msra.mxu0 0.0
  %737 = vmatprep.subr.mxu0 0.0
  %738 = vmatpush2.msra.mxu0 0.0
  %739 = vmatprep.subr.mxu0 0.0
  %740 = vmatpush2.msra.mxu0 0.0
  %741 = vmatprep.subr.mxu0 0.0
  %742 = vmatpush2.msra.mxu0 0.0
  %743 = vmatprep.subr.mxu0 0.0
  %744 = vmatpush2.msra.mxu0 0.0
  %745 = vmatprep.subr.mxu0 0.0
  %746 = vmatpush2.msra.mxu0 0.0
  %747 = vmatprep.subr.mxu0 0.0
  %748 = vmatpush2.msra.mxu0 0.0
  %749 = vmatprep.subr.mxu0 0.0
  %750 = vmatpush2.msra.mxu0 0.0
  %751 = vmatprep.subr.mxu0 0.0
  %752 = vmatpush2.msra.mxu0 0.0
  %753 = vmatprep.subr.mxu0 0.0
  %754 = vmatpush2.msra.mxu0 0.0
  %755 = vmatprep.subr.mxu0 0.0
  %756 = vmatpush2.msra.mxu0 0.0
  %757 = vmatprep.subr.mxu0 0.0
  %758 = vmatpush2.msra.mxu0 0.0
  %759 = vmatprep.subr.mxu0 0.0
  %760 = vmatpush2.msra.mxu0 0.0
  %761 = vmatprep.mubr.f32.mxu0 0.0
  %762 = vmatmul.mubr.f32.gmra.mxu0 %v111
  %v763 = vpop.f32.mrf.mxu0
  %v764 = vadd.f32 0.0, %v763
  %v765 = vpop.f32.mrf.mxu0
  %766 = vmatprep.mubr.f32.mxu0 0.0
  %767 = vmatmul.mubr.f32.gmra.mxu0 %v114
  %v768 = vpop.f32.mrf.mxu0
  %v769 = vadd.f32 0.0, %v768
  %v770 = vpop.f32.mrf.mxu0
  %771 = vmatprep.mubr.f32.mxu0 0.0
  %772 = vmatmul.mubr.f32.gmra.mxu0 %v117
  %v773 = vpop.f32.mrf.mxu0
  %v774 = vadd.f32 0.0, %v773
  %v775 = vpop.f32.mrf.mxu0
  %776 = vmatprep.mubr.f32.mxu0 0.0
  %777 = vmatmul.mubr.f32.gmra.mxu0 %v120
  %v778 = vpop.f32.mrf.mxu0
  %v779 = vadd.f32 0.0, %v778
  %v780 = vpop.f32.mrf.mxu0
  %781 = vmatprep.mubr.f32.mxu0 0.0
  %782 = vmatmul.mubr.f32.gmra.mxu0 %v123
  %v783 = vpop.f32.mrf.mxu0
  %v784 = vadd.f32 0.0, %v783
  %v785 = vpop.f32.mrf.mxu0
  %786 = vmatprep.mubr.f32.mxu0 0.0
  %787 = vmatmul.mubr.f32.gmra.mxu0 %v126
  %v788 = vpop.f32.mrf.mxu0
  %v789 = vadd.f32 0.0, %v788
  %v790 = vpop.f32.mrf.mxu0
  %791 = vmatprep.mubr.f32.mxu0 0.0
  %792 = vmatmul.mubr.f32.gmra.mxu0 %v129
  %v793 = vpop.f32.mrf.mxu0
  %v794 = vadd.f32 0.0, %v793
  %v795 = vpop.f32.mrf.mxu0
  %796 = vmatprep.mubr.f32.mxu0 0.0
  %797 = vmatmul.mubr.f32.gmra.mxu0 %v132
  %v798 = vpop.f32.mrf.mxu0
  %v799 = vadd.f32 0.0, %v798
  %v800 = vpop.f32.mrf.mxu0
  %801 = vmatprep.mubr.f32.mxu0 0.0
  %802 = vmatmul.mubr.f32.gmra.mxu0 %v135
  %v803 = vpop.f32.mrf.mxu0
  %v804 = vadd.f32 0.0, %v803
  %v805 = vpop.f32.mrf.mxu0
  %806 = vmatprep.mubr.f32.mxu0 0.0
  %807 = vmatmul.mubr.f32.gmra.mxu0 %v138
  %v808 = vpop.f32.mrf.mxu0
  %v809 = vadd.f32 0.0, %v808
  %v810 = vpop.f32.mrf.mxu0
  %811 = vdwg.mxu0
  %820 = vrot.lane.b32.xlu0 %v33, 32
  %v821 = vpop.permute.xlu0 %820
  %822 = vrot.lane.b32.xlu0 %v34, 32
  %v823 = vpop.permute.xlu0 %822
  %824 = vrot.lane.b32.xlu0 %v37, 32
  %v825 = vpop.permute.xlu0 %824
  %826 = vrot.lane.b32.xlu0 %v38, 32
  %v827 = vpop.permute.xlu0 %826
  %828 = vrot.lane.b32.xlu0 %v41, 32
  %v829 = vpop.permute.xlu0 %828
  %830 = vrot.lane.b32.xlu0 %v42, 32
  %v831 = vpop.permute.xlu0 %830
  %832 = vrot.lane.b32.xlu0 %v45, 32
  %v833 = vpop.permute.xlu0 %832
  %834 = vrot.lane.b32.xlu0 %v46, 32
  %v835 = vpop.permute.xlu0 %834
  %v836 = vsel %vm259, %v821, %v823
  %v837 = vsel %vm259, %v825, %v827
  %v838 = vsel %vm259, %v829, %v831
  %v839 = vsel %vm259, %v833, %v835
  %v845 = vsel %vm259, %v764, 0
  %v848 = vsel %vm259, %v769, 0
  %v851 = vsel %vm259, %v774, 0
  %v854 = vsel %vm259, %v779, 0
  %v857 = vsel %vm259, %v784, 0
  %v860 = vsel %vm259, %v789, 0
  %v863 = vsel %vm259, %v794, 0
  %v866 = vsel %vm259, %v799, 0
  %v869 = vsel %vm259, %v804, 0
  %v872 = vsel %vm259, %v809, 0
  %874 = vmatprep.subr.mxu0 0.0
  %875 = vmatpush1.msra.mxu0 0.0
  %876 = vmatprep.subr.mxu0 0.0
  %877 = vmatpush1.msra.mxu0 0.0
  %878 = vmatprep.subr.mxu0 0.0
  %879 = vmatpush1.msra.mxu0 0.0
  %880 = vmatprep.subr.mxu0 0.0
  %881 = vmatpush1.msra.mxu0 0.0
  %882 = vmatprep.subr.mxu0 0.0
  %883 = vmatpush1.msra.mxu0 0.0
  %884 = vmatprep.subr.mxu0 0.0
  %885 = vmatpush1.msra.mxu0 0.0
  %886 = vmatprep.subr.mxu0 0.0
  %887 = vmatpush1.msra.mxu0 0.0
  %888 = vmatprep.subr.mxu0 0.0
  %889 = vmatpush1.msra.mxu0 0.0
  %890 = vmatprep.subr.mxu0 0.0
  %891 = vmatpush1.msra.mxu0 0.0
  %892 = vmatprep.subr.mxu0 0.0
  %893 = vmatpush1.msra.mxu0 0.0
  %894 = vmatprep.subr.mxu0 0.0
  %895 = vmatpush1.msra.mxu0 0.0
  %896 = vmatprep.subr.mxu0 0.0
  %897 = vmatpush1.msra.mxu0 0.0
  %898 = vmatprep.subr.mxu0 0.0
  %899 = vmatpush1.msra.mxu0 %v839
  %900 = vmatprep.subr.mxu0 0.0
  %901 = vmatpush1.msra.mxu0 %v838
  %902 = vmatprep.subr.mxu0 0.0
  %903 = vmatpush1.msra.mxu0 %v837
  %904 = vmatprep.subr.mxu0 0.0
  %905 = vmatpush1.msra.mxu0 %v836
  %906 = vmatprep.subr.mxu0 0.0
  %907 = vmatpush2.msra.mxu0 0.0
  %908 = vmatprep.subr.mxu0 0.0
  %909 = vmatpush2.msra.mxu0 0.0
  %910 = vmatprep.subr.mxu0 0.0
  %911 = vmatpush2.msra.mxu0 0.0
  %912 = vmatprep.subr.mxu0 0.0
  %913 = vmatpush2.msra.mxu0 0.0
  %914 = vmatprep.subr.mxu0 0.0
  %915 = vmatpush2.msra.mxu0 0.0
  %916 = vmatprep.subr.mxu0 0.0
  %917 = vmatpush2.msra.mxu0 0.0
  %918 = vmatprep.subr.mxu0 0.0
  %919 = vmatpush2.msra.mxu0 0.0
  %920 = vmatprep.subr.mxu0 0.0
  %921 = vmatpush2.msra.mxu0 0.0
  %922 = vmatprep.subr.mxu0 0.0
  %923 = vmatpush2.msra.mxu0 0.0
  %924 = vmatprep.subr.mxu0 0.0
  %925 = vmatpush2.msra.mxu0 0.0
  %926 = vmatprep.subr.mxu0 0.0
  %927 = vmatpush2.msra.mxu0 0.0
  %928 = vmatprep.subr.mxu0 0.0
  %929 = vmatpush2.msra.mxu0 0.0
  %930 = vmatprep.subr.mxu0 0.0
  %931 = vmatpush2.msra.mxu0 0.0
  %932 = vmatprep.subr.mxu0 0.0
  %933 = vmatpush2.msra.mxu0 0.0
  %934 = vmatprep.subr.mxu0 0.0
  %935 = vmatpush2.msra.mxu0 0.0
  %936 = vmatprep.subr.mxu0 0.0
  %937 = vmatpush2.msra.mxu0 0.0
  %938 = vmatprep.mubr.f32.mxu0 0.0
  %939 = vmatmul.mubr.f32.gmra.mxu0 %v845
  %v940 = vpop.f32.mrf.mxu0
  %v941 = vadd.f32 0.0, %v940
  %v942 = vpop.f32.mrf.mxu0
  %943 = vmatprep.mubr.f32.mxu0 0.0
  %944 = vmatmul.mubr.f32.gmra.mxu0 %v848
  %v945 = vpop.f32.mrf.mxu0
  %v946 = vadd.f32 0.0, %v945
  %v947 = vpop.f32.mrf.mxu0
  %948 = vmatprep.mubr.f32.mxu0 0.0
  %949 = vmatmul.mubr.f32.gmra.mxu0 %v851
  %v950 = vpop.f32.mrf.mxu0
  %v951 = vadd.f32 0.0, %v950
  %v952 = vpop.f32.mrf.mxu0
  %953 = vmatprep.mubr.f32.mxu0 0.0
  %954 = vmatmul.mubr.f32.gmra.mxu0 %v854
  %v955 = vpop.f32.mrf.mxu0
  %v956 = vadd.f32 0.0, %v955
  %v957 = vpop.f32.mrf.mxu0
  %958 = vmatprep.mubr.f32.mxu0 0.0
  %959 = vmatmul.mubr.f32.gmra.mxu0 %v857
  %v960 = vpop.f32.mrf.mxu0
  %v961 = vadd.f32 0.0, %v960
  %v962 = vpop.f32.mrf.mxu0
  %963 = vmatprep.mubr.f32.mxu0 0.0
  %964 = vmatmul.mubr.f32.gmra.mxu0 %v860
  %v965 = vpop.f32.mrf.mxu0
  %v966 = vadd.f32 0.0, %v965
  %v967 = vpop.f32.mrf.mxu0
  %968 = vmatprep.mubr.f32.mxu0 0.0
  %969 = vmatmul.mubr.f32.gmra.mxu0 %v863
  %v970 = vpop.f32.mrf.mxu0
  %v971 = vadd.f32 0.0, %v970
  %v972 = vpop.f32.mrf.mxu0
  %973 = vmatprep.mubr.f32.mxu0 0.0
  %974 = vmatmul.mubr.f32.gmra.mxu0 %v866
  %v975 = vpop.f32.mrf.mxu0
  %v976 = vadd.f32 0.0, %v975
  %v977 = vpop.f32.mrf.mxu0
  %978 = vmatprep.mubr.f32.mxu0 0.0
  %979 = vmatmul.mubr.f32.gmra.mxu0 %v869
  %v980 = vpop.f32.mrf.mxu0
  %v981 = vadd.f32 0.0, %v980
  %v982 = vpop.f32.mrf.mxu0
  %983 = vmatprep.mubr.f32.mxu0 0.0
  %984 = vmatmul.mubr.f32.gmra.mxu0 %v872
  %v985 = vpop.f32.mrf.mxu0
  %v986 = vadd.f32 0.0, %v985
  %v987 = vpop.f32.mrf.mxu0
  %988 = vdwg.mxu0
  %993 = vrot.lane.b32.xlu0 %v35, 32
  %v994 = vpop.permute.xlu0 %993
  %995 = vrot.lane.b32.xlu0 %v39, 32
  %v996 = vpop.permute.xlu0 %995
  %997 = vrot.lane.b32.xlu0 %v43, 32
  %v998 = vpop.permute.xlu0 %997
  %999 = vrot.lane.b32.xlu0 %v47, 32
  %v1000 = vpop.permute.xlu0 %999
  %v1001 = vsel %vm259, %v823, %v994
  %v1002 = vsel %vm259, %v827, %v996
  %v1003 = vsel %vm259, %v831, %v998
  %v1004 = vsel %vm259, %v835, %v1000
  %v1010 = vsel %vm259, %v689, 0
  %v1013 = vsel %vm259, %v690, 0
  %v1016 = vsel %vm259, %v691, 0
  %v1019 = vsel %vm259, %v692, 0
  %v1021 = vsel %vm259, %v693, 0
  %1023 = vmatprep.subr.mxu0 0.0
  %1024 = vmatpush1.msra.mxu0 0.0
  %1025 = vmatprep.subr.mxu0 0.0
  %1026 = vmatpush1.msra.mxu0 0.0
  %1027 = vmatprep.subr.mxu0 0.0
  %1028 = vmatpush1.msra.mxu0 0.0
  %1029 = vmatprep.subr.mxu0 0.0
  %1030 = vmatpush1.msra.mxu0 0.0
  %1031 = vmatprep.subr.mxu0 0.0
  %1032 = vmatpush1.msra.mxu0 0.0
  %1033 = vmatprep.subr.mxu0 0.0
  %1034 = vmatpush1.msra.mxu0 0.0
  %1035 = vmatprep.subr.mxu0 0.0
  %1036 = vmatpush1.msra.mxu0 0.0
  %1037 = vmatprep.subr.mxu0 0.0
  %1038 = vmatpush1.msra.mxu0 0.0
  %1039 = vmatprep.subr.mxu0 0.0
  %1040 = vmatpush1.msra.mxu0 0.0
  %1041 = vmatprep.subr.mxu0 0.0
  %1042 = vmatpush1.msra.mxu0 0.0
  %1043 = vmatprep.subr.mxu0 0.0
  %1044 = vmatpush1.msra.mxu0 0.0
  %1045 = vmatprep.subr.mxu0 0.0
  %1046 = vmatpush1.msra.mxu0 0.0
  %1047 = vmatprep.subr.mxu0 0.0
  %1048 = vmatpush1.msra.mxu0 %v1004
  %1049 = vmatprep.subr.mxu0 0.0
  %1050 = vmatpush1.msra.mxu0 %v1003
  %1051 = vmatprep.subr.mxu0 0.0
  %1052 = vmatpush1.msra.mxu0 %v1002
  %1053 = vmatprep.subr.mxu0 0.0
  %1054 = vmatpush1.msra.mxu0 %v1001
  %1055 = vmatprep.subr.mxu0 0.0
  %1056 = vmatpush2.msra.mxu0 0.0
  %1057 = vmatprep.subr.mxu0 0.0
  %1058 = vmatpush2.msra.mxu0 0.0
  %1059 = vmatprep.subr.mxu0 0.0
  %1060 = vmatpush2.msra.mxu0 0.0
  %1061 = vmatprep.subr.mxu0 0.0
  %1062 = vmatpush2.msra.mxu0 0.0
  %1063 = vmatprep.subr.mxu0 0.0
  %1064 = vmatpush2.msra.mxu0 0.0
  %1065 = vmatprep.subr.mxu0 0.0
  %1066 = vmatpush2.msra.mxu0 0.0
  %1067 = vmatprep.subr.mxu0 0.0
  %1068 = vmatpush2.msra.mxu0 0.0
  %1069 = vmatprep.subr.mxu0 0.0
  %1070 = vmatpush2.msra.mxu0 0.0
  %1071 = vmatprep.subr.mxu0 0.0
  %1072 = vmatpush2.msra.mxu0 0.0
  %1073 = vmatprep.subr.mxu0 0.0
  %1074 = vmatpush2.msra.mxu0 0.0
  %1075 = vmatprep.subr.mxu0 0.0
  %1076 = vmatpush2.msra.mxu0 0.0
  %1077 = vmatprep.subr.mxu0 0.0
  %1078 = vmatpush2.msra.mxu0 0.0
  %1079 = vmatprep.subr.mxu0 0.0
  %1080 = vmatpush2.msra.mxu0 0.0
  %1081 = vmatprep.subr.mxu0 0.0
  %1082 = vmatpush2.msra.mxu0 0.0
  %1083 = vmatprep.subr.mxu0 0.0
  %1084 = vmatpush2.msra.mxu0 0.0
  %1085 = vmatprep.subr.mxu0 0.0
  %1086 = vmatpush2.msra.mxu0 0.0
  %1087 = vmatprep.mubr.f32.mxu0 0.0
  %1088 = vmatmul.mubr.f32.gmra.mxu0 %v1010
  %v1089 = vpop.f32.mrf.mxu0
  %v1090 = vadd.f32 0.0, %v1089
  %v1091 = vpop.f32.mrf.mxu0
  %1092 = vmatprep.mubr.f32.mxu0 0.0
  %1093 = vmatmul.mubr.f32.gmra.mxu0 %v1013
  %v1094 = vpop.f32.mrf.mxu0
  %v1095 = vadd.f32 0.0, %v1094
  %v1096 = vpop.f32.mrf.mxu0
  %1097 = vmatprep.mubr.f32.mxu0 0.0
  %1098 = vmatmul.mubr.f32.gmra.mxu0 %v1016
  %v1099 = vpop.f32.mrf.mxu0
  %v1100 = vadd.f32 0.0, %v1099
  %v1101 = vpop.f32.mrf.mxu0
  %1102 = vmatprep.mubr.f32.mxu0 0.0
  %1103 = vmatmul.mubr.f32.gmra.mxu0 %v1019
  %v1104 = vpop.f32.mrf.mxu0
  %v1105 = vadd.f32 0.0, %v1104
  %v1106 = vpop.f32.mrf.mxu0
  %1107 = vmatprep.mubr.f32.mxu0 0.0
  %1108 = vmatmul.mubr.f32.gmra.mxu0 %v1021
  %v1109 = vpop.f32.mrf.mxu0
  %v1110 = vadd.f32 0.0, %v1109
  %v1111 = vpop.f32.mrf.mxu0
  %1112 = vdwg.mxu0
  %v1113 = vmul.f32 %v941, %v64
  %v1114 = vmul.f32 %v946, %v65
  %v1115 = vmul.f32 %v951, %v66
  %v1116 = vmul.f32 %v956, %v67
  %v1117 = vmul.f32 %v961, %v68
  %v1118 = vmul.f32 %v941, %v89
  %v1119 = vmul.f32 %v946, %v90
  %v1120 = vmul.f32 %v951, %v91
  %v1121 = vmul.f32 %v956, %v92
  %v1122 = vmul.f32 %v961, %v93
  %1128 = vrot.lane.b32.xlu0 %v1118, 96
  %v1129 = vpop.permute.xlu0 %1128
  %1130 = vrot.lane.b32.xlu0 %v1119, 96
  %v1131 = vpop.permute.xlu0 %1130
  %1132 = vrot.lane.b32.xlu0 %v1120, 96
  %v1133 = vpop.permute.xlu0 %1132
  %1134 = vrot.lane.b32.xlu0 %v1121, 96
  %v1135 = vpop.permute.xlu0 %1134
  %1136 = vrot.lane.b32.xlu0 %v1122, 96
  %v1137 = vpop.permute.xlu0 %1136
  %v1143 = vadd.f32 %v1113, %v1129
  %v1144 = vadd.f32 %v1114, %v1131
  %v1145 = vadd.f32 %v1115, %v1133
  %v1146 = vadd.f32 %v1116, %v1135
  %v1147 = vadd.f32 %v1117, %v1137
  %v1148 = vmul.f32 %v941, %v104
  %v1149 = vmul.f32 %v946, %v105
  %v1150 = vmul.f32 %v951, %v106
  %v1151 = vmul.f32 %v956, %v107
  %v1152 = vmul.f32 %v961, %v108
  %1158 = vrot.lane.b32.xlu0 %v1148, 64
  %v1159 = vpop.permute.xlu0 %1158
  %1160 = vrot.lane.b32.xlu0 %v1149, 64
  %v1161 = vpop.permute.xlu0 %1160
  %1162 = vrot.lane.b32.xlu0 %v1150, 64
  %v1163 = vpop.permute.xlu0 %1162
  %1164 = vrot.lane.b32.xlu0 %v1151, 64
  %v1165 = vpop.permute.xlu0 %1164
  %1166 = vrot.lane.b32.xlu0 %v1152, 64
  %v1167 = vpop.permute.xlu0 %1166
  %v1173 = vadd.f32 %v1143, %v1159
  %v1174 = vadd.f32 %v1144, %v1161
  %v1175 = vadd.f32 %v1145, %v1163
  %v1176 = vadd.f32 %v1146, %v1165
  %v1177 = vadd.f32 %v1147, %v1167
  %1183 = vrot.lane.b32.xlu0 %v966, 32
  %v1184 = vpop.permute.xlu0 %1183
  %1185 = vrot.lane.b32.xlu0 %v971, 32
  %v1186 = vpop.permute.xlu0 %1185
  %1187 = vrot.lane.b32.xlu0 %v976, 32
  %v1188 = vpop.permute.xlu0 %1187
  %1189 = vrot.lane.b32.xlu0 %v981, 32
  %v1190 = vpop.permute.xlu0 %1189
  %1191 = vrot.lane.b32.xlu0 %v986, 32
  %v1192 = vpop.permute.xlu0 %1191
  %v1198 = vadd.f32 %v1173, %v1184
  %v1199 = vadd.f32 %v1174, %v1186
  %v1200 = vadd.f32 %v1175, %v1188
  %v1201 = vadd.f32 %v1176, %v1190
  %v1202 = vadd.f32 %v1177, %v1192
  %v1203 = vmul.f32 %v1090, %v64
  %v1204 = vmul.f32 %v1095, %v65
  %v1205 = vmul.f32 %v1100, %v66
  %v1206 = vmul.f32 %v1105, %v67
  %v1207 = vmul.f32 %v1110, %v68
  %v1208 = vmul.f32 %v1090, %v89
  %v1209 = vmul.f32 %v1095, %v90
  %v1210 = vmul.f32 %v1100, %v91
  %v1211 = vmul.f32 %v1105, %v92
  %v1212 = vmul.f32 %v1110, %v93
  %1218 = vrot.lane.b32.xlu0 %v1208, 96
  %v1219 = vpop.permute.xlu0 %1218
  %1220 = vrot.lane.b32.xlu0 %v1209, 96
  %v1221 = vpop.permute.xlu0 %1220
  %1222 = vrot.lane.b32.xlu0 %v1210, 96
  %v1223 = vpop.permute.xlu0 %1222
  %1224 = vrot.lane.b32.xlu0 %v1211, 96
  %v1225 = vpop.permute.xlu0 %1224
  %1226 = vrot.lane.b32.xlu0 %v1212, 96
  %v1227 = vpop.permute.xlu0 %1226
  %v1233 = vadd.f32 %v1203, %v1219
  %v1234 = vadd.f32 %v1204, %v1221
  %v1235 = vadd.f32 %v1205, %v1223
  %v1236 = vadd.f32 %v1206, %v1225
  %v1237 = vadd.f32 %v1207, %v1227
  %v1238 = vmul.f32 %v1090, %v104
  %v1239 = vmul.f32 %v1095, %v105
  %v1240 = vmul.f32 %v1100, %v106
  %v1241 = vmul.f32 %v1105, %v107
  %v1242 = vmul.f32 %v1110, %v108
  %1248 = vrot.lane.b32.xlu0 %v1238, 64
  %v1249 = vpop.permute.xlu0 %1248
  %1250 = vrot.lane.b32.xlu0 %v1239, 64
  %v1251 = vpop.permute.xlu0 %1250
  %1252 = vrot.lane.b32.xlu0 %v1240, 64
  %v1253 = vpop.permute.xlu0 %1252
  %1254 = vrot.lane.b32.xlu0 %v1241, 64
  %v1255 = vpop.permute.xlu0 %1254
  %1256 = vrot.lane.b32.xlu0 %v1242, 64
  %v1257 = vpop.permute.xlu0 %1256
  %v1263 = vadd.f32 %v1233, %v1249
  %v1264 = vadd.f32 %v1234, %v1251
  %v1265 = vadd.f32 %v1235, %v1253
  %v1266 = vadd.f32 %v1236, %v1255
  %v1267 = vadd.f32 %v1237, %v1257
  %v1268 = vadd.f32 %v1198, %v1263
  %v1269 = vadd.f32 %v1199, %v1264
  %v1270 = vadd.f32 %v1200, %v1265
  %v1271 = vadd.f32 %v1201, %v1266
  %v1272 = vadd.f32 %v1202, %v1267
  %1273 = vrot.lane.b32.xlu0 %v27, 92
  %v1274 = vpop.permute.xlu0 %1273
  %1275 = vrot.lane.b32.xlu0 %v28, 92
  %v1276 = vpop.permute.xlu0 %1275
  %1277 = vrot.lane.b32.xlu0 %v29, 92
  %v1278 = vpop.permute.xlu0 %1277
  %1279 = vrot.lane.b32.xlu0 %v30, 92
  %v1280 = vpop.permute.xlu0 %1279
  %1281 = vrot.lane.b32.xlu0 %v31, 92
  %v1282 = vpop.permute.xlu0 %1281
  %v1288 = vadd.f32 %v1268, %v1274
  %v1289 = vadd.f32 %v1269, %v1276
  %v1290 = vadd.f32 %v1270, %v1278
  %v1291 = vadd.f32 %v1271, %v1280
  %v1292 = vadd.f32 %v1272, %v1282
  %v1293 = vld [vmem:[%s3] sm:$0xff]
  %v1294 = vld [vmem:[%s3 + $0x8] sm:$0x3]
  %v1295 = vlaneseq
  %v1296 = vand.u32 %v1295, 127
  %v1297 = vadd.s32 %v1293, 28
  %v1298 = vadd.s32 %v1294, 28
  %1299 = vset.pattern.permute.xlu0 0
  %1300 = vperm.xlu0 %1299, %v1297
  %v1301 = vpop.permute.xlu0 %1300
  %1302 = vset.pattern.permute.xlu0 0
  %1303 = vperm.xlu0 %1302, %v1298
  %v1304 = vpop.permute.xlu0 %1303
  %vm1305 = vcmp.eq.s32.totalorder %v1296, %v1301
  %vm1306 = vcmp.eq.s32.totalorder %v1296, %v1304
  %v1307 = vsel %vm1305, 1, 0
  %v1308 = vsel %vm1306, 1, 0
  %v1309 = vcvt.s32.f32 %v1307
  %v1310 = vcvt.s32.f32 %v1308
  %1311 = vset.pattern.permute.xlu0 1
  %1312 = vperm.xlu0 %1311, %v1293
  %v1313 = vpop.permute.xlu0 %1312
  %1314 = vset.pattern.permute.xlu0 1
  %1315 = vperm.xlu0 %1314, %v1294
  %v1316 = vpop.permute.xlu0 %1315
  %vm1317 = vcmp.eq.s32.totalorder %v1296, %v1313
  %vm1318 = vcmp.eq.s32.totalorder %v1296, %v1316
  %v1319 = vsel %vm1317, 1, 0
  %v1320 = vsel %vm1318, 1, 0
  %v1321 = vcvt.s32.f32 %v1319
  %v1322 = vcvt.s32.f32 %v1320
  %v1324 = vsel %vm109, %v1309, 0
  %v1327 = vsel %vm109, %v1310, 0
  %v1330 = vsel %vm140, %v1292, 0
  %1332 = vmatprep.subr.mxu0 0.0
  %1333 = vmatpush1.msra.mxu0 0.0
  %1334 = vmatprep.subr.mxu0 0.0
  %1335 = vmatpush1.msra.mxu0 0.0
  %1336 = vmatprep.subr.mxu0 0.0
  %1337 = vmatpush1.msra.mxu0 0.0
  %1338 = vmatprep.subr.mxu0 0.0
  %1339 = vmatpush1.msra.mxu0 0.0
  %1340 = vmatprep.subr.mxu0 0.0
  %1341 = vmatpush1.msra.mxu0 0.0
  %1342 = vmatprep.subr.mxu0 0.0
  %1343 = vmatpush1.msra.mxu0 0.0
  %1344 = vmatprep.subr.mxu0 0.0
  %1345 = vmatpush1.msra.mxu0 0.0
  %1346 = vmatprep.subr.mxu0 0.0
  %1347 = vmatpush1.msra.mxu0 0.0
  %1348 = vmatprep.subr.mxu0 0.0
  %1349 = vmatpush1.msra.mxu0 0.0
  %1350 = vmatprep.subr.mxu0 0.0
  %1351 = vmatpush1.msra.mxu0 0.0
  %1352 = vmatprep.subr.mxu0 0.0
  %1353 = vmatpush1.msra.mxu0 0.0
  %1354 = vmatprep.subr.mxu0 0.0
  %1355 = vmatpush1.msra.mxu0 %v1330
  %1356 = vmatprep.subr.mxu0 0.0
  %1357 = vmatpush1.msra.mxu0 %v1291
  %1358 = vmatprep.subr.mxu0 0.0
  %1359 = vmatpush1.msra.mxu0 %v1290
  %1360 = vmatprep.subr.mxu0 0.0
  %1361 = vmatpush1.msra.mxu0 %v1289
  %1362 = vmatprep.subr.mxu0 0.0
  %1363 = vmatpush1.msra.mxu0 %v1288
  %1364 = vmatprep.subr.mxu0 0.0
  %1365 = vmatpush2.msra.mxu0 0.0
  %1366 = vmatprep.subr.mxu0 0.0
  %1367 = vmatpush2.msra.mxu0 0.0
  %1368 = vmatprep.subr.mxu0 0.0
  %1369 = vmatpush2.msra.mxu0 0.0
  %1370 = vmatprep.subr.mxu0 0.0
  %1371 = vmatpush2.msra.mxu0 0.0
  %1372 = vmatprep.subr.mxu0 0.0
  %1373 = vmatpush2.msra.mxu0 0.0
  %1374 = vmatprep.subr.mxu0 0.0
  %1375 = vmatpush2.msra.mxu0 0.0
  %1376 = vmatprep.subr.mxu0 0.0
  %1377 = vmatpush2.msra.mxu0 0.0
  %1378 = vmatprep.subr.mxu0 0.0
  %1379 = vmatpush2.msra.mxu0 0.0
  %1380 = vmatprep.subr.mxu0 0.0
  %1381 = vmatpush2.msra.mxu0 0.0
  %1382 = vmatprep.subr.mxu0 0.0
  %1383 = vmatpush2.msra.mxu0 0.0
  %1384 = vmatprep.subr.mxu0 0.0
  %1385 = vmatpush2.msra.mxu0 0.0
  %1386 = vmatprep.subr.mxu0 0.0
  %1387 = vmatpush2.msra.mxu0 0.0
  %1388 = vmatprep.subr.mxu0 0.0
  %1389 = vmatpush2.msra.mxu0 0.0
  %1390 = vmatprep.subr.mxu0 0.0
  %1391 = vmatpush2.msra.mxu0 0.0
  %1392 = vmatprep.subr.mxu0 0.0
  %1393 = vmatpush2.msra.mxu0 0.0
  %1394 = vmatprep.subr.mxu0 0.0
  %1395 = vmatpush2.msra.mxu0 0.0
  %1396 = vmatprep.mubr.f32.mxu0 0.0
  %1397 = vmatmul.mubr.f32.gmra.mxu0 %v1324
  %v1398 = vpop.f32.mrf.mxu0
  %v1399 = vadd.f32 0.0, %v1398
  %v1400 = vpop.f32.mrf.mxu0
  %1401 = vmatprep.mubr.f32.mxu0 0.0
  %1402 = vmatmul.mubr.f32.gmra.mxu0 %v1327
  %v1403 = vpop.f32.mrf.mxu0
  %v1404 = vadd.f32 0.0, %v1403
  %v1405 = vpop.f32.mrf.mxu0
  %1406 = vdwg.mxu0
  %v1408 = vsel %vm109, %v1321, 0
  %v1411 = vsel %vm109, %v1322, 0
  %1413 = vmatprep.subr.mxu0 0.0
  %1414 = vmatpush1.msra.mxu0 0.0
  %1415 = vmatprep.subr.mxu0 0.0
  %1416 = vmatpush1.msra.mxu0 0.0
  %1417 = vmatprep.subr.mxu0 0.0
  %1418 = vmatpush1.msra.mxu0 0.0
  %1419 = vmatprep.subr.mxu0 0.0
  %1420 = vmatpush1.msra.mxu0 0.0
  %1421 = vmatprep.subr.mxu0 0.0
  %1422 = vmatpush1.msra.mxu0 0.0
  %1423 = vmatprep.subr.mxu0 0.0
  %1424 = vmatpush1.msra.mxu0 0.0
  %1425 = vmatprep.subr.mxu0 0.0
  %1426 = vmatpush1.msra.mxu0 0.0
  %1427 = vmatprep.subr.mxu0 0.0
  %1428 = vmatpush1.msra.mxu0 0.0
  %1429 = vmatprep.subr.mxu0 0.0
  %1430 = vmatpush1.msra.mxu0 0.0
  %1431 = vmatprep.subr.mxu0 0.0
  %1432 = vmatpush1.msra.mxu0 0.0
  %1433 = vmatprep.subr.mxu0 0.0
  %1434 = vmatpush1.msra.mxu0 0.0
  %1435 = vmatprep.subr.mxu0 0.0
  %1436 = vmatpush1.msra.mxu0 %v1330
  %1437 = vmatprep.subr.mxu0 0.0
  %1438 = vmatpush1.msra.mxu0 %v1291
  %1439 = vmatprep.subr.mxu0 0.0
  %1440 = vmatpush1.msra.mxu0 %v1290
  %1441 = vmatprep.subr.mxu0 0.0
  %1442 = vmatpush1.msra.mxu0 %v1289
  %1443 = vmatprep.subr.mxu0 0.0
  %1444 = vmatpush1.msra.mxu0 %v1288
  %1445 = vmatprep.subr.mxu0 0.0
  %1446 = vmatpush2.msra.mxu0 0.0
  %1447 = vmatprep.subr.mxu0 0.0
  %1448 = vmatpush2.msra.mxu0 0.0
  %1449 = vmatprep.subr.mxu0 0.0
  %1450 = vmatpush2.msra.mxu0 0.0
  %1451 = vmatprep.subr.mxu0 0.0
  %1452 = vmatpush2.msra.mxu0 0.0
  %1453 = vmatprep.subr.mxu0 0.0
  %1454 = vmatpush2.msra.mxu0 0.0
  %1455 = vmatprep.subr.mxu0 0.0
  %1456 = vmatpush2.msra.mxu0 0.0
  %1457 = vmatprep.subr.mxu0 0.0
  %1458 = vmatpush2.msra.mxu0 0.0
  %1459 = vmatprep.subr.mxu0 0.0
  %1460 = vmatpush2.msra.mxu0 0.0
  %1461 = vmatprep.subr.mxu0 0.0
  %1462 = vmatpush2.msra.mxu0 0.0
  %1463 = vmatprep.subr.mxu0 0.0
  %1464 = vmatpush2.msra.mxu0 0.0
  %1465 = vmatprep.subr.mxu0 0.0
  %1466 = vmatpush2.msra.mxu0 0.0
  %1467 = vmatprep.subr.mxu0 0.0
  %1468 = vmatpush2.msra.mxu0 0.0
  %1469 = vmatprep.subr.mxu0 0.0
  %1470 = vmatpush2.msra.mxu0 0.0
  %1471 = vmatprep.subr.mxu0 0.0
  %1472 = vmatpush2.msra.mxu0 0.0
  %1473 = vmatprep.subr.mxu0 0.0
  %1474 = vmatpush2.msra.mxu0 0.0
  %1475 = vmatprep.subr.mxu0 0.0
  %1476 = vmatpush2.msra.mxu0 0.0
  %1477 = vmatprep.mubr.f32.mxu0 0.0
  %1478 = vmatmul.mubr.f32.gmra.mxu0 %v1408
  %v1479 = vpop.f32.mrf.mxu0
  %v1480 = vadd.f32 0.0, %v1479
  %v1481 = vpop.f32.mrf.mxu0
  %1482 = vmatprep.mubr.f32.mxu0 0.0
  %1483 = vmatmul.mubr.f32.gmra.mxu0 %v1411
  %v1484 = vpop.f32.mrf.mxu0
  %v1485 = vadd.f32 0.0, %v1484
  %v1486 = vpop.f32.mrf.mxu0
  %1487 = vdwg.mxu0
  %v1488 = vmul.f32 %v1399, %v1480
  %v1489 = vmul.f32 %v1404, %v1485
  %v1490 = vsel %vm259, %v1488, 0.0
  %1491 = vadd.xlane.f32.xlu0 %v1490
  %v1492 = vpop.xlane.xlu0 %1491
  %vm1493 = vcmask 254976
  %v1494 = vsel %vm1493, %v1489, 0.0
  %1495 = vadd.xlane.f32.xlu0 %v1494
  %v1496 = vpop.xlane.xlu0 %1495
  %vm1497 = vcmask 7168
  %1498 = vst.msk [vmem:[%s4] sm:$0xff] %vm1497, %v1492
  %vm1499 = vcmask 1024
  %1500 = vst.msk [vmem:[%s4 + $0x8] sm:$0x3] %vm1499, %v1496
  // Predicated region
  $region18: #{model_forward.1} parent=0 // pred_check
    _
  $region19: #{model_forward.1} parent=0 // pred_check_branch
    %1502 = sbr.rel (0) target = $region21
  $region20: #{model_forward.1} parent=0 // pred_region
    _
  $region21: #{model_forward.1} parent=0 // pred_fallthru
    _
  // Predicated region
  $region22: #{model_forward.1} parent=0 // pred_check
    _
  $region23: #{model_forward.1} parent=0 // pred_check_branch
    %1504 = sbr.rel (0) target = $region25
  $region24: #{model_forward.1} parent=0 // pred_region
    _
  $region25: #{model_forward.1} parent=0 // pred_fallthru
    _

</llo_original>
